<compile_context>
chip_gen: v6e
topology: v6e:2x2x1
jax: 0.10.0
libtpu: 0.0.40
codegen_flags: <defaults>
</compile_context>

<pallas_src>
import functools
import math

import jax
import jax.numpy as jnp
from jax.experimental import pallas as pl
from jax.experimental.pallas import tpu as pltpu


_LANE = 128


# -----------------------------------------------------------------------------
# Parameter slab layout: one bf16 array.  Every weight sub-block occupies its own
# 128-lane-aligned column block; all biases live in the last row at the same
# column offsets as the weights they belong to.
# -----------------------------------------------------------------------------
def _slab_layout(input_dim, hidden_dim, latent_dim):
    F, H, L = input_dim, hidden_dim, latent_dim
    assert max(F, H, L) <= _LANE, "each weight sub-block must fit one 128-lane block"
    groups = (                      # (name, rows, #128-lane column blocks)
        ("w1", F, 2),               # [W1_self | W1_neigh]
        ("w2", H, 2),               # [W2_self | W2_neigh]
        ("wqkv", H, 3),             # [Wq | Wk | Wv]
        ("wg_t", H, 1),             # gate weight, rows acting on h0
        ("wg_b", H, 1),             # gate weight, rows acting on attended
        ("we", H, 1),               # VAE encoder hidden
        ("wmulv", H, 2),            # [Wmu | Wlogvar]
        ("wc1_t", L, 1),            # edge classifier layer 1, rows acting on mu_i
        ("wc1_b", L, 1),            # edge classifier layer 1, rows acting on mu_j
        ("wc2", H, 1),              # edge classifier layer 2
    )
    offs, col, max_rows = {}, 0, 0
    for name, r, nblk in groups:
        offs[name] = col
        col += nblk * _LANE
        max_rows = max(max_rows, r)
    bias_row = max_rows
    return offs, bias_row, max_rows + 1, col


def pack_params(params, input_dim, hidden_dim, latent_dim):
    """Pack all weights/biases into one bf16 slab (done once, outside the kernel)."""
    F, H, L = input_dim, hidden_dim, latent_dim
    offs, bias_row, n_rows, n_cols = _slab_layout(F, H, L)
    slab = jnp.zeros((n_rows, n_cols), jnp.float32)
    p = params

    def put_w(s, name, blk, wmat):
        c0 = offs[name] + blk * _LANE
        wmat = jnp.asarray(wmat, jnp.float32)
        return s.at[: wmat.shape[0], c0:c0 + wmat.shape[1]].set(wmat)

    def put_b(s, name, blk, bvec):
        c0 = offs[name] + blk * _LANE
        bvec = jnp.asarray(bvec, jnp.float32).reshape(1, -1)
        return s.at[bias_row:bias_row + 1, c0:c0 + bvec.shape[1]].set(bvec)

    slab = put_w(slab, "w1", 0, p["w1s"]); slab = put_w(slab, "w1", 1, p["w1n"])
    slab = put_b(slab, "w1", 0, p["b1"])
    slab = put_w(slab, "w2", 0, p["w2s"]); slab = put_w(slab, "w2", 1, p["w2n"])
    slab = put_b(slab, "w2", 0, p["b2"])
    slab = put_w(slab, "wqkv", 0, p["wq"]); slab = put_w(slab, "wqkv", 1, p["wk"])
    slab = put_w(slab, "wqkv", 2, p["wv"])
    slab = put_b(slab, "wqkv", 0, p["bq"]); slab = put_b(slab, "wqkv", 1, p["bk"])
    slab = put_b(slab, "wqkv", 2, p["bv"])
    slab = put_w(slab, "wg_t", 0, p["wg"][:H]); slab = put_w(slab, "wg_b", 0, p["wg"][H:])
    slab = put_b(slab, "wg_t", 0, p["bg"])
    slab = put_w(slab, "we", 0, p["we"]); slab = put_b(slab, "we", 0, p["be"])
    slab = put_w(slab, "wmulv", 0, p["wmu"]); slab = put_w(slab, "wmulv", 1, p["wlv"])
    slab = put_b(slab, "wmulv", 0, p["bmu"]); slab = put_b(slab, "wmulv", 1, p["blv"])
    slab = put_w(slab, "wc1_t", 0, p["wc1"][:L]); slab = put_w(slab, "wc1_b", 0, p["wc1"][L:])
    slab = put_b(slab, "wc1_t", 0, p["bc1"])
    slab = put_w(slab, "wc2", 0, p["wc2"]); slab = put_b(slab, "wc2", 0, p["bc2"])
    return slab.astype(jnp.bfloat16)


# -----------------------------------------------------------------------------
# Fused forward kernel
# -----------------------------------------------------------------------------
def _make_kernel(N, F, H, L, M, E, MP, offs, bias_row):
    scale = 1.0 / math.sqrt(H)
    f32 = jnp.float32
    bf16 = jnp.bfloat16

    def kernel(x_ref, ei_ref, pairs_ref, w_ref,
               att_ref, mulv_ref, edge_ref, ent_ref):
        # Static slab slices are free views; every column offset is 128-lane aligned.
        def w(name, rows, cols):
            c0 = offs[name]
            return w_ref[0:rows, c0:c0 + cols]

        def b(name, cols):
            c0 = offs[name]
            return w_ref[bias_row:bias_row + 1, c0:c0 + cols].astype(f32)

        def mm(a, wmat):  # feed the MXU bf16, accumulate f32
            return jnp.dot(a.astype(bf16), wmat.astype(bf16),
                           preferred_element_type=f32)

        x = x_ref[...]

        # ----- adjacency built in-kernel from edge_index (no external scatter) -----
        ei = ei_ref[...]                                            # (2, E) int32
        node_ids = jax.lax.broadcasted_iota(jnp.int32, (N, E), 0)
        dmat = (node_ids == ei[1:2, :]).astype(bf16)                # row d: edges with dst == d
        smat = (node_ids == ei[0:1, :]).astype(bf16)                # row s: edges with src == s
        counts = jax.lax.dot_general(dmat, smat,
                                     dimension_numbers=(((1,), (1,)), ((), ())),
                                     preferred_element_type=f32)    # adj[d, s] = #edges s->d
        adj = jnp.minimum(counts, 1.0)
        deg = jnp.maximum(jnp.sum(adj, axis=-1, keepdims=True), 1.0)
        adjn = (adj / deg).astype(bf16)                             # row-normalized aggregator

        # ----- GraphSAGE layer 1 (fused [self|neigh] weights, ReLU) -----
        xw = mm(x, w("w1", F, 2 * _LANE))                           # (N, 256), padded lanes zero
        h = jnp.maximum(
            xw[:, 0:H] + mm(adjn, xw[:, _LANE:_LANE + H]) + b("w1", H), 0.0)

        # ----- GraphSAGE layer 2 (linear final layer) -----
        hw = mm(h, w("w2", H, 2 * _LANE))
        h0 = hw[:, 0:H] + mm(adjn, hw[:, _LANE:_LANE + H]) + b("w2", H)

        # ----- self-attention: fused QKV projection -----
        qkv = mm(h0, w("wqkv", H, 3 * _LANE)) + b("wqkv", 3 * _LANE)
        q = qkv[:, 0:H]                                             # all slices vreg-aligned
        k = qkv[:, _LANE:_LANE + H]
        v = qkv[:, 2 * _LANE:2 * _LANE + H]

        scores = jax.lax.dot_general(q.astype(bf16), k.astype(bf16),
                                     dimension_numbers=(((1,), (1,)), ((), ())),
                                     preferred_element_type=f32) * scale
        m = jnp.max(scores, axis=-1, keepdims=True)
        sc = scores - m
        e = jnp.exp(sc)
        s = jnp.sum(e, axis=-1, keepdims=True)
        att = e / s                                                 # exact normalization
        att_ref[...] = att

        # mean row entropy from softmax stats (exact division)
        row_ent = jnp.log(s) - jnp.sum(e * sc, axis=-1, keepdims=True) / s
        ent_ref[0, 0] = jnp.sum(row_ent) * (1.0 / N)

        # ----- sigmoid gate fusion (row-split gate weight, no concat) -----
        attended = mm(att, v)
        gate = jax.nn.sigmoid(
            mm(h0, w("wg_t", H, H)) + mm(attended, w("wg_b", H, H)) + b("wg_t", H))
        h1 = gate * attended + (1.0 - gate) * h0

        # ----- VAE encoder (fused [mu|logvar] projection) -----
        he = jnp.maximum(mm(h1, w("we", H, H)) + b("we", H), 0.0)
        mulv = mm(he, w("wmulv", H, 2 * _LANE)) + b("wmulv", 2 * _LANE)
        mulv_ref[...] = mulv                                        # lane-dense (N, 256) store
        mu = mulv[:, 0:L]

        # ----- edge classifier: single fused one-hot gather + split weights -----
        pairs = pairs_ref[...]                                      # (M, 2) int32
        col_ids = jax.lax.broadcasted_iota(jnp.int32, (M, N), 1)
        sel = jnp.concatenate(
            [(col_ids == pairs[:, 0:1]).astype(f32),
             (col_ids == pairs[:, 1:2]).astype(f32)], axis=0)       # (2M, N)
        gathered = jnp.dot(sel, mu, preferred_element_type=f32)     # (2M, L) exact f32 gather
        mu_i = gathered[0:M]
        mu_j = gathered[M:2 * M]
        hc = jnp.maximum(
            mm(mu_i, w("wc1_t", L, H)) + mm(mu_j, w("wc1_b", L, H)) + b("wc1_t", H), 0.0)
        # (1, M) logits row: contract wc2 (H,1) with hc (M,H)
        logits = jax.lax.dot_general(w("wc2", H, 1).astype(bf16), hc.astype(bf16),
                                     dimension_numbers=(((0,), (1,)), ((), ())),
                                     preferred_element_type=f32) + b("wc2", 1)
        if MP > M:                                                  # lane-dense (1, MP) store
            logits = jnp.concatenate(
                [logits, jnp.zeros((1, MP - M), f32)], axis=1)
        edge_ref[...] = logits

    return kernel


# -----------------------------------------------------------------------------
# Wrapper
# -----------------------------------------------------------------------------
def regnet_forward(x, edge_index, node_pairs, packed_params, *, hidden_dim, latent_dim):
    N, F = x.shape
    E = edge_index.shape[1]
    M = node_pairs.shape[0]
    H, L = hidden_dim, latent_dim
    MP = max(_LANE, -(-M // _LANE) * _LANE)
    offs, bias_row, n_rows, n_cols = _slab_layout(F, H, L)
    assert packed_params.shape == (n_rows, n_cols)

    vmem = pl.BlockSpec(memory_space=pltpu.MemorySpace.VMEM)
    smem = pl.BlockSpec(memory_space=pltpu.MemorySpace.SMEM)

    kernel = _make_kernel(N, F, H, L, M, E, MP, offs, bias_row)

    att_w, mulv, edge_row, ent = pl.pallas_call(
        kernel,
        out_shape=(
            jax.ShapeDtypeStruct((N, N), jnp.float32),              # attention weights
            jax.ShapeDtypeStruct((N, 2 * _LANE), jnp.float32),      # [mu @ 0 | logvar @ 128]
            jax.ShapeDtypeStruct((1, MP), jnp.float32),             # edge logits (lane-dense)
            jax.ShapeDtypeStruct((1, 1), jnp.float32),              # mean row entropy (SMEM)
        ),
        in_specs=[vmem, vmem, vmem, vmem],
        out_specs=(vmem, vmem, vmem, smem),
    )(x, edge_index.astype(jnp.int32), node_pairs.astype(jnp.int32), packed_params)

    mu = mulv[:, :L]
    logvar = mulv[:, _LANE:_LANE + L]
    edge_preds = edge_row[0, :M]        # (M,) raw logits (matches reference .squeeze())
    row_ent = ent[0, 0]                 # scalar
    return edge_preds, att_w, row_ent, mu, logvar


# -----------------------------------------------------------------------------
# Deterministic parameter initialization (natural shapes; packed separately)
# -----------------------------------------------------------------------------
def init_params(key, input_dim, hidden_dim, latent_dim):
    def nxt():
        nonlocal key
        key, sub = jax.random.split(key)
        return sub

    def w(shape, scale=0.1):
        return scale * jax.random.normal(nxt(), shape, jnp.float32)

    H, L, F = hidden_dim, latent_dim, input_dim
    return dict(
        # GraphSAGE layer 1 / 2
        w1s=w((F, H)), w1n=w((F, H)), b1=w((1, H)),
        w2s=w((H, H)), w2n=w((H, H)), b2=w((1, H)),
        # attention
        wq=w((H, H)), bq=w((1, H)),
        wk=w((H, H)), bk=w((1, H)),
        wv=w((H, H)), bv=w((1, H)),
        wg=w((2 * H, H)), bg=w((1, H)),
        # VAE encoder
        we=w((H, H)), be=w((1, H)),
        wmu=w((H, L)), bmu=w((1, L)),
        wlv=w((H, L)), blv=w((1, L)),
        # edge classifier
        wc1=w((2 * L, H)), bc1=w((1, H)),
        wc2=w((H, 1)), bc2=w((1, 1)),
    )


# -----------------------------------------------------------------------------
if __name__ == "__main__":
    key = jax.random.PRNGKey(0)
    N, F_IN, HIDDEN, LATENT, E, M = 16, 8, 32, 16, 40, 8

    k_x, k_e, k_p, k_w = jax.random.split(key, 4)
    x = jax.random.normal(k_x, (N, F_IN), jnp.float32)
    edge_index = jax.random.randint(k_e, (2, E), 0, N, jnp.int32)
    node_pairs = jax.random.randint(k_p, (M, 2), 0, N, jnp.int32)
    params = init_params(k_w, F_IN, HIDDEN, LATENT)
    packed = pack_params(params, F_IN, HIDDEN, LATENT)      # one-time bf16 packing

    fwd = jax.jit(functools.partial(regnet_forward, hidden_dim=HIDDEN, latent_dim=LATENT))
    edge_preds, att_w, row_ent, mu, logvar = fwd(x, edge_index, node_pairs, packed)
    jax.block_until_ready((edge_preds, att_w, row_ent, mu, logvar))

    assert edge_preds.shape == (M,)
    assert att_w.shape == (N, N)
    assert row_ent.shape == ()
    assert mu.shape == (N, LATENT) and logvar.shape == (N, LATENT)
    assert bool(jnp.all(jnp.isfinite(edge_preds)))
    assert bool(jnp.all(jnp.isfinite(att_w)))
    assert bool(jnp.isfinite(row_ent))
    # exact softmax normalization -> tight row-sum check
    assert bool(jnp.allclose(att_w.sum(axis=-1), 1.0, atol=1e-4))

    print("KERNEL_OK")
</pallas_src>

<mosaic_0001>
module attributes {stable_mosaic.version = 11 : i64} {
  func.func @kernel(%arg0: memref<16x8xf32, #tpu.memory_space<vmem>>, %arg1: memref<2x40xi32, #tpu.memory_space<vmem>>, %arg2: memref<8x2xi32, #tpu.memory_space<vmem>>, %arg3: memref<33x1920xbf16, #tpu.memory_space<vmem>>, %arg4: memref<16x16xf32, #tpu.memory_space<vmem>>, %arg5: memref<16x256xf32, #tpu.memory_space<vmem>>, %arg6: memref<1x128xf32, #tpu.memory_space<vmem>>, %arg7: memref<1x1xf32, #tpu.memory_space<smem>>) attributes {dimension_semantics = [], scalar_prefetch = 0 : i64, scratch_operands = 0 : i64, tpu.core_type = #tpu.core_type<tc>} {
    %c0 = arith.constant 0 : index
    %c0_0 = arith.constant 0 : index
    %0 = vector.load %arg0[%c0, %c0_0] : memref<16x8xf32, #tpu.memory_space<vmem>>, vector<16x8xf32>
    %c0_1 = arith.constant 0 : index
    %c0_2 = arith.constant 0 : index
    %1 = vector.load %arg1[%c0_1, %c0_2] : memref<2x40xi32, #tpu.memory_space<vmem>>, vector<2x40xi32>
    %2 = tpu.iota {dimensions = array<i32: 0>} : vector<16x40xi32>
    %3 = vector.extract_strided_slice %1 {offsets = [1, 0], sizes = [1, 40], strides = [1, 1]} : vector<2x40xi32> to vector<1x40xi32>
    %4 = vector.broadcast %3 : vector<1x40xi32> to vector<16x40xi32>
    %5 = arith.cmpi eq, %2, %4 : vector<16x40xi32>
    %6 = arith.extui %5 : vector<16x40xi1> to vector<16x40xi32>
    %7 = arith.sitofp %6 : vector<16x40xi32> to vector<16x40xf32>
    %8 = arith.truncf %7 : vector<16x40xf32> to vector<16x40xbf16>
    %9 = vector.extract_strided_slice %1 {offsets = [0, 0], sizes = [1, 40], strides = [1, 1]} : vector<2x40xi32> to vector<1x40xi32>
    %10 = vector.broadcast %9 : vector<1x40xi32> to vector<16x40xi32>
    %11 = arith.cmpi eq, %2, %10 : vector<16x40xi32>
    %12 = arith.extui %11 : vector<16x40xi1> to vector<16x40xi32>
    %13 = arith.sitofp %12 : vector<16x40xi32> to vector<16x40xf32>
    %14 = arith.truncf %13 : vector<16x40xf32> to vector<16x40xbf16>
    %cst = arith.constant dense<0.000000e+00> : vector<16x16xf32>
    %15 = tpu.matmul %8, %14, %cst {dimension_numbers = #tpu.dot_dimension_numbers<[1], [1], [0], [0], [0, 0, 1, 0], [], []>} : vector<16x40xbf16>, vector<16x40xbf16>, vector<16x16xf32> -> vector<16x16xf32>
    %cst_3 = arith.constant 1.000000e+00 : f32
    %16 = vector.broadcast %cst_3 : f32 to vector<16x16xf32>
    %17 = arith.minimumf %15, %16 : vector<16x16xf32>
    %cst_4 = arith.constant dense<0.000000e+00> : vector<16xf32>
    %18 = vector.multi_reduction <add>, %17, %cst_4 [1] : vector<16x16xf32> to vector<16xf32>
    %19 = vector.shape_cast %18 : vector<16xf32> to vector<16x1xf32>
    %cst_5 = arith.constant 1.000000e+00 : f32
    %20 = vector.broadcast %cst_5 : f32 to vector<16x1xf32>
    %21 = arith.maximumf %19, %20 : vector<16x1xf32>
    %22 = vector.broadcast %21 : vector<16x1xf32> to vector<16x16xf32>
    %23 = arith.divf %17, %22 : vector<16x16xf32>
    %24 = arith.truncf %23 : vector<16x16xf32> to vector<16x16xbf16>
    %c0_6 = arith.constant 0 : index
    %c0_7 = arith.constant 0 : index
    %25 = vector.load %arg3[%c0_6, %c0_7] : memref<33x1920xbf16, #tpu.memory_space<vmem>>, vector<8x256xbf16>
    %26 = arith.truncf %0 : vector<16x8xf32> to vector<16x8xbf16>
    %cst_8 = arith.constant dense<0.000000e+00> : vector<16x256xf32>
    %27 = tpu.matmul %26, %25, %cst_8 {dimension_numbers = #tpu.dot_dimension_numbers<[1], [0], [0], [1], [0, 0, 1, 1], [], []>} : vector<16x8xbf16>, vector<8x256xbf16>, vector<16x256xf32> -> vector<16x256xf32>
    %28 = vector.extract_strided_slice %27 {offsets = [0, 0], sizes = [16, 32], strides = [1, 1]} : vector<16x256xf32> to vector<16x32xf32>
    %29 = vector.extract_strided_slice %27 {offsets = [0, 128], sizes = [16, 32], strides = [1, 1]} : vector<16x256xf32> to vector<16x32xf32>
    %30 = arith.truncf %29 : vector<16x32xf32> to vector<16x32xbf16>
    %cst_9 = arith.constant dense<0.000000e+00> : vector<16x32xf32>
    %31 = tpu.matmul %24, %30, %cst_9 {dimension_numbers = #tpu.dot_dimension_numbers<[1], [0], [0], [1], [0, 0, 1, 1], [], []>} : vector<16x16xbf16>, vector<16x32xbf16>, vector<16x32xf32> -> vector<16x32xf32>
    %32 = arith.addf %28, %31 : vector<16x32xf32>
    %c32 = arith.constant 32 : index
    %c0_10 = arith.constant 0 : index
    %33 = vector.load %arg3[%c32, %c0_10] : memref<33x1920xbf16, #tpu.memory_space<vmem>>, vector<1x32xbf16>
    %34 = arith.extf %33 : vector<1x32xbf16> to vector<1x32xf32>
    %35 = vector.broadcast %34 : vector<1x32xf32> to vector<16x32xf32>
    %36 = arith.addf %32, %35 : vector<16x32xf32>
    %cst_11 = arith.constant 0.000000e+00 : f32
    %37 = vector.broadcast %cst_11 : f32 to vector<16x32xf32>
    %38 = arith.maximumf %36, %37 : vector<16x32xf32>
    %c0_12 = arith.constant 0 : index
    %c256 = arith.constant 256 : index
    %39 = vector.load %arg3[%c0_12, %c256] : memref<33x1920xbf16, #tpu.memory_space<vmem>>, vector<32x256xbf16>
    %40 = arith.truncf %38 : vector<16x32xf32> to vector<16x32xbf16>
    %cst_13 = arith.constant dense<0.000000e+00> : vector<16x256xf32>
    %41 = tpu.matmul %40, %39, %cst_13 {dimension_numbers = #tpu.dot_dimension_numbers<[1], [0], [0], [1], [0, 0, 1, 1], [], []>} : vector<16x32xbf16>, vector<32x256xbf16>, vector<16x256xf32> -> vector<16x256xf32>
    %42 = vector.extract_strided_slice %41 {offsets = [0, 0], sizes = [16, 32], strides = [1, 1]} : vector<16x256xf32> to vector<16x32xf32>
    %43 = vector.extract_strided_slice %41 {offsets = [0, 128], sizes = [16, 32], strides = [1, 1]} : vector<16x256xf32> to vector<16x32xf32>
    %44 = arith.truncf %43 : vector<16x32xf32> to vector<16x32xbf16>
    %cst_14 = arith.constant dense<0.000000e+00> : vector<16x32xf32>
    %45 = tpu.matmul %24, %44, %cst_14 {dimension_numbers = #tpu.dot_dimension_numbers<[1], [0], [0], [1], [0, 0, 1, 1], [], []>} : vector<16x16xbf16>, vector<16x32xbf16>, vector<16x32xf32> -> vector<16x32xf32>
    %46 = arith.addf %42, %45 : vector<16x32xf32>
    %c32_15 = arith.constant 32 : index
    %c256_16 = arith.constant 256 : index
    %47 = vector.load %arg3[%c32_15, %c256_16] : memref<33x1920xbf16, #tpu.memory_space<vmem>>, vector<1x32xbf16>
    %48 = arith.extf %47 : vector<1x32xbf16> to vector<1x32xf32>
    %49 = vector.broadcast %48 : vector<1x32xf32> to vector<16x32xf32>
    %50 = arith.addf %46, %49 : vector<16x32xf32>
    %c0_17 = arith.constant 0 : index
    %c512 = arith.constant 512 : index
    %51 = vector.load %arg3[%c0_17, %c512] : memref<33x1920xbf16, #tpu.memory_space<vmem>>, vector<32x384xbf16>
    %52 = arith.truncf %50 : vector<16x32xf32> to vector<16x32xbf16>
    %cst_18 = arith.constant dense<0.000000e+00> : vector<16x384xf32>
    %53 = tpu.matmul %52, %51, %cst_18 {dimension_numbers = #tpu.dot_dimension_numbers<[1], [0], [0], [1], [0, 0, 1, 1], [], []>} : vector<16x32xbf16>, vector<32x384xbf16>, vector<16x384xf32> -> vector<16x384xf32>
    %c32_19 = arith.constant 32 : index
    %c512_20 = arith.constant 512 : index
    %54 = vector.load %arg3[%c32_19, %c512_20] : memref<33x1920xbf16, #tpu.memory_space<vmem>>, vector<1x384xbf16>
    %55 = arith.extf %54 : vector<1x384xbf16> to vector<1x384xf32>
    %56 = vector.broadcast %55 : vector<1x384xf32> to vector<16x384xf32>
    %57 = arith.addf %53, %56 : vector<16x384xf32>
    %58 = vector.extract_strided_slice %57 {offsets = [0, 0], sizes = [16, 32], strides = [1, 1]} : vector<16x384xf32> to vector<16x32xf32>
    %59 = vector.extract_strided_slice %57 {offsets = [0, 128], sizes = [16, 32], strides = [1, 1]} : vector<16x384xf32> to vector<16x32xf32>
    %60 = vector.extract_strided_slice %57 {offsets = [0, 256], sizes = [16, 32], strides = [1, 1]} : vector<16x384xf32> to vector<16x32xf32>
    %61 = arith.truncf %58 : vector<16x32xf32> to vector<16x32xbf16>
    %62 = arith.truncf %59 : vector<16x32xf32> to vector<16x32xbf16>
    %cst_21 = arith.constant dense<0.000000e+00> : vector<16x16xf32>
    %63 = tpu.matmul %61, %62, %cst_21 {dimension_numbers = #tpu.dot_dimension_numbers<[1], [1], [0], [0], [0, 0, 1, 0], [], []>} : vector<16x32xbf16>, vector<16x32xbf16>, vector<16x16xf32> -> vector<16x16xf32>
    %cst_22 = arith.constant 0.176776692 : f32
    %64 = vector.broadcast %cst_22 : f32 to vector<16x16xf32>
    %65 = arith.mulf %63, %64 : vector<16x16xf32>
    %cst_23 = arith.constant dense<0xFF800000> : vector<16xf32>
    %66 = vector.multi_reduction <maximumf>, %65, %cst_23 [1] : vector<16x16xf32> to vector<16xf32>
    %67 = vector.shape_cast %66 : vector<16xf32> to vector<16x1xf32>
    %68 = vector.broadcast %67 : vector<16x1xf32> to vector<16x16xf32>
    %69 = arith.subf %65, %68 : vector<16x16xf32>
    %70 = math.exp %69 : vector<16x16xf32>
    %cst_24 = arith.constant dense<0.000000e+00> : vector<16xf32>
    %71 = vector.multi_reduction <add>, %70, %cst_24 [1] : vector<16x16xf32> to vector<16xf32>
    %72 = vector.shape_cast %71 : vector<16xf32> to vector<16x1xf32>
    %73 = vector.broadcast %72 : vector<16x1xf32> to vector<16x16xf32>
    %74 = arith.divf %70, %73 : vector<16x16xf32>
    %c0_25 = arith.constant 0 : index
    %c0_26 = arith.constant 0 : index
    %75 = vector.load %arg4[%c0_25, %c0_26] : memref<16x16xf32, #tpu.memory_space<vmem>>, vector<16x16xf32>
    tpu.vector_store %arg4[%c0_25, %c0_26], %74 {strides = array<i32>} : memref<16x16xf32, #tpu.memory_space<vmem>>, vector<16x16xf32>,
    %76 = math.log %72 : vector<16x1xf32>
    %77 = arith.mulf %70, %69 : vector<16x16xf32>
    %cst_27 = arith.constant dense<0.000000e+00> : vector<16xf32>
    %78 = vector.multi_reduction <add>, %77, %cst_27 [1] : vector<16x16xf32> to vector<16xf32>
    %79 = vector.shape_cast %78 : vector<16xf32> to vector<16x1xf32>
    %80 = arith.divf %79, %72 : vector<16x1xf32>
    %81 = arith.subf %76, %80 : vector<16x1xf32>
    %82 = vector.shape_cast %81 : vector<16x1xf32> to vector<1x16x1xf32>
    %cst_28 = arith.constant dense<0.000000e+00> : vector<1xf32>
    %83 = vector.multi_reduction <add>, %82, %cst_28 [1, 2] : vector<1x16x1xf32> to vector<1xf32>
    %84 = vector.shape_cast %83 : vector<1xf32> to vector<1x1x1xf32>
    %85 = vector.extract %84[0, 0, 0] : f32 from vector<1x1x1xf32>
    %cst_29 = arith.constant 6.250000e-02 : f32
    %86 = arith.mulf %85, %cst_29 : f32
    %c0_30 = arith.constant 0 : index
    %c0_31 = arith.constant 0 : index
    %87 = memref.load %arg7[%c0_30, %c0_31] : memref<1x1xf32, #tpu.memory_space<smem>>
    memref.store %86, %arg7[%c0_30, %c0_31] : memref<1x1xf32, #tpu.memory_space<smem>>
    %88 = arith.truncf %74 : vector<16x16xf32> to vector<16x16xbf16>
    %89 = arith.truncf %60 : vector<16x32xf32> to vector<16x32xbf16>
    %cst_32 = arith.constant dense<0.000000e+00> : vector<16x32xf32>
    %90 = tpu.matmul %88, %89, %cst_32 {dimension_numbers = #tpu.dot_dimension_numbers<[1], [0], [0], [1], [0, 0, 1, 1], [], []>} : vector<16x16xbf16>, vector<16x32xbf16>, vector<16x32xf32> -> vector<16x32xf32>
    %c0_33 = arith.constant 0 : index
    %c896 = arith.constant 896 : index
    %91 = vector.load %arg3[%c0_33, %c896] : memref<33x1920xbf16, #tpu.memory_space<vmem>>, vector<32x32xbf16>
    %92 = arith.truncf %50 : vector<16x32xf32> to vector<16x32xbf16>
    %cst_34 = arith.constant dense<0.000000e+00> : vector<16x32xf32>
    %93 = tpu.matmul %92, %91, %cst_34 {dimension_numbers = #tpu.dot_dimension_numbers<[1], [0], [0], [1], [0, 0, 1, 1], [], []>} : vector<16x32xbf16>, vector<32x32xbf16>, vector<16x32xf32> -> vector<16x32xf32>
    %c0_35 = arith.constant 0 : index
    %c1024 = arith.constant 1024 : index
    %94 = vector.load %arg3[%c0_35, %c1024] : memref<33x1920xbf16, #tpu.memory_space<vmem>>, vector<32x32xbf16>
    %95 = arith.truncf %90 : vector<16x32xf32> to vector<16x32xbf16>
    %cst_36 = arith.constant dense<0.000000e+00> : vector<16x32xf32>
    %96 = tpu.matmul %95, %94, %cst_36 {dimension_numbers = #tpu.dot_dimension_numbers<[1], [0], [0], [1], [0, 0, 1, 1], [], []>} : vector<16x32xbf16>, vector<32x32xbf16>, vector<16x32xf32> -> vector<16x32xf32>
    %97 = arith.addf %93, %96 : vector<16x32xf32>
    %c32_37 = arith.constant 32 : index
    %c896_38 = arith.constant 896 : index
    %98 = vector.load %arg3[%c32_37, %c896_38] : memref<33x1920xbf16, #tpu.memory_space<vmem>>, vector<1x32xbf16>
    %99 = arith.extf %98 : vector<1x32xbf16> to vector<1x32xf32>
    %100 = vector.broadcast %99 : vector<1x32xf32> to vector<16x32xf32>
    %101 = arith.addf %97, %100 : vector<16x32xf32>
    %102 = arith.negf %101 : vector<16x32xf32>
    %103 = math.exp %102 : vector<16x32xf32>
    %cst_39 = arith.constant 1.000000e+00 : f32
    %104 = vector.broadcast %cst_39 : f32 to vector<16x32xf32>
    %105 = arith.addf %104, %103 : vector<16x32xf32>
    %106 = arith.divf %104, %105 : vector<16x32xf32>
    %107 = arith.mulf %106, %90 : vector<16x32xf32>
    %cst_40 = arith.constant 1.000000e+00 : f32
    %108 = vector.broadcast %cst_40 : f32 to vector<16x32xf32>
    %109 = arith.subf %108, %106 : vector<16x32xf32>
    %110 = arith.mulf %109, %50 : vector<16x32xf32>
    %111 = arith.addf %107, %110 : vector<16x32xf32>
    %c0_41 = arith.constant 0 : index
    %c1152 = arith.constant 1152 : index
    %112 = vector.load %arg3[%c0_41, %c1152] : memref<33x1920xbf16, #tpu.memory_space<vmem>>, vector<32x32xbf16>
    %113 = arith.truncf %111 : vector<16x32xf32> to vector<16x32xbf16>
    %cst_42 = arith.constant dense<0.000000e+00> : vector<16x32xf32>
    %114 = tpu.matmul %113, %112, %cst_42 {dimension_numbers = #tpu.dot_dimension_numbers<[1], [0], [0], [1], [0, 0, 1, 1], [], []>} : vector<16x32xbf16>, vector<32x32xbf16>, vector<16x32xf32> -> vector<16x32xf32>
    %c32_43 = arith.constant 32 : index
    %c1152_44 = arith.constant 1152 : index
    %115 = vector.load %arg3[%c32_43, %c1152_44] : memref<33x1920xbf16, #tpu.memory_space<vmem>>, vector<1x32xbf16>
    %116 = arith.extf %115 : vector<1x32xbf16> to vector<1x32xf32>
    %117 = vector.broadcast %116 : vector<1x32xf32> to vector<16x32xf32>
    %118 = arith.addf %114, %117 : vector<16x32xf32>
    %cst_45 = arith.constant 0.000000e+00 : f32
    %119 = vector.broadcast %cst_45 : f32 to vector<16x32xf32>
    %120 = arith.maximumf %118, %119 : vector<16x32xf32>
    %c0_46 = arith.constant 0 : index
    %c1280 = arith.constant 1280 : index
    %121 = vector.load %arg3[%c0_46, %c1280] : memref<33x1920xbf16, #tpu.memory_space<vmem>>, vector<32x256xbf16>
    %122 = arith.truncf %120 : vector<16x32xf32> to vector<16x32xbf16>
    %cst_47 = arith.constant dense<0.000000e+00> : vector<16x256xf32>
    %123 = tpu.matmul %122, %121, %cst_47 {dimension_numbers = #tpu.dot_dimension_numbers<[1], [0], [0], [1], [0, 0, 1, 1], [], []>} : vector<16x32xbf16>, vector<32x256xbf16>, vector<16x256xf32> -> vector<16x256xf32>
    %c32_48 = arith.constant 32 : index
    %c1280_49 = arith.constant 1280 : index
    %124 = vector.load %arg3[%c32_48, %c1280_49] : memref<33x1920xbf16, #tpu.memory_space<vmem>>, vector<1x256xbf16>
    %125 = arith.extf %124 : vector<1x256xbf16> to vector<1x256xf32>
    %126 = vector.broadcast %125 : vector<1x256xf32> to vector<16x256xf32>
    %127 = arith.addf %123, %126 : vector<16x256xf32>
    %c0_50 = arith.constant 0 : index
    %c0_51 = arith.constant 0 : index
    %128 = vector.load %arg5[%c0_50, %c0_51] : memref<16x256xf32, #tpu.memory_space<vmem>>, vector<16x256xf32>
    tpu.vector_store %arg5[%c0_50, %c0_51], %127 {strides = array<i32>} : memref<16x256xf32, #tpu.memory_space<vmem>>, vector<16x256xf32>,
    %129 = vector.extract_strided_slice %127 {offsets = [0, 0], sizes = [16, 16], strides = [1, 1]} : vector<16x256xf32> to vector<16x16xf32>
    %c0_52 = arith.constant 0 : index
    %c0_53 = arith.constant 0 : index
    %130 = vector.load %arg2[%c0_52, %c0_53] : memref<8x2xi32, #tpu.memory_space<vmem>>, vector<8x2xi32>
    %131 = tpu.iota {dimensions = array<i32: 1>} : vector<8x16xi32>
    %132 = vector.extract_strided_slice %130 {offsets = [0, 0], sizes = [8, 1], strides = [1, 1]} : vector<8x2xi32> to vector<8x1xi32>
    %133 = vector.broadcast %132 : vector<8x1xi32> to vector<8x16xi32>
    %134 = arith.cmpi eq, %131, %133 : vector<8x16xi32>
    %135 = arith.extui %134 : vector<8x16xi1> to vector<8x16xi32>
    %136 = arith.sitofp %135 : vector<8x16xi32> to vector<8x16xf32>
    %137 = vector.extract_strided_slice %130 {offsets = [0, 1], sizes = [8, 1], strides = [1, 1]} : vector<8x2xi32> to vector<8x1xi32>
    %138 = vector.broadcast %137 : vector<8x1xi32> to vector<8x16xi32>
    %139 = arith.cmpi eq, %131, %138 : vector<8x16xi32>
    %140 = arith.extui %139 : vector<8x16xi1> to vector<8x16xi32>
    %141 = arith.sitofp %140 : vector<8x16xi32> to vector<8x16xf32>
    %142 = tpu.concatenate %136, %141 in 0 : vector<8x16xf32>, vector<8x16xf32> -> vector<16x16xf32>
    %cst_54 = arith.constant dense<0.000000e+00> : vector<16x16xf32>
    %143 = tpu.matmul %142, %129, %cst_54 {dimension_numbers = #tpu.dot_dimension_numbers<[1], [0], [0], [1], [0, 0, 1, 1], [], []>} : vector<16x16xf32>, vector<16x16xf32>, vector<16x16xf32> -> vector<16x16xf32>
    %144 = vector.extract_strided_slice %143 {offsets = [0, 0], sizes = [8, 16], strides = [1, 1]} : vector<16x16xf32> to vector<8x16xf32>
    %145 = vector.extract_strided_slice %143 {offsets = [8, 0], sizes = [8, 16], strides = [1, 1]} : vector<16x16xf32> to vector<8x16xf32>
    %c0_55 = arith.constant 0 : index
    %c1536 = arith.constant 1536 : index
    %146 = vector.load %arg3[%c0_55, %c1536] : memref<33x1920xbf16, #tpu.memory_space<vmem>>, vector<16x32xbf16>
    %147 = arith.truncf %144 : vector<8x16xf32> to vector<8x16xbf16>
    %cst_56 = arith.constant dense<0.000000e+00> : vector<8x32xf32>
    %148 = tpu.matmul %147, %146, %cst_56 {dimension_numbers = #tpu.dot_dimension_numbers<[1], [0], [0], [1], [0, 0, 1, 1], [], []>} : vector<8x16xbf16>, vector<16x32xbf16>, vector<8x32xf32> -> vector<8x32xf32>
    %c0_57 = arith.constant 0 : index
    %c1664 = arith.constant 1664 : index
    %149 = vector.load %arg3[%c0_57, %c1664] : memref<33x1920xbf16, #tpu.memory_space<vmem>>, vector<16x32xbf16>
    %150 = arith.truncf %145 : vector<8x16xf32> to vector<8x16xbf16>
    %cst_58 = arith.constant dense<0.000000e+00> : vector<8x32xf32>
    %151 = tpu.matmul %150, %149, %cst_58 {dimension_numbers = #tpu.dot_dimension_numbers<[1], [0], [0], [1], [0, 0, 1, 1], [], []>} : vector<8x16xbf16>, vector<16x32xbf16>, vector<8x32xf32> -> vector<8x32xf32>
    %152 = arith.addf %148, %151 : vector<8x32xf32>
    %c32_59 = arith.constant 32 : index
    %c1536_60 = arith.constant 1536 : index
    %153 = vector.load %arg3[%c32_59, %c1536_60] : memref<33x1920xbf16, #tpu.memory_space<vmem>>, vector<1x32xbf16>
    %154 = arith.extf %153 : vector<1x32xbf16> to vector<1x32xf32>
    %155 = vector.broadcast %154 : vector<1x32xf32> to vector<8x32xf32>
    %156 = arith.addf %152, %155 : vector<8x32xf32>
    %cst_61 = arith.constant 0.000000e+00 : f32
    %157 = vector.broadcast %cst_61 : f32 to vector<8x32xf32>
    %158 = arith.maximumf %156, %157 : vector<8x32xf32>
    %c0_62 = arith.constant 0 : index
    %c1792 = arith.constant 1792 : index
    %159 = vector.load %arg3[%c0_62, %c1792] : memref<33x1920xbf16, #tpu.memory_space<vmem>>, vector<32x1xbf16>
    %160 = arith.truncf %158 : vector<8x32xf32> to vector<8x32xbf16>
    %cst_63 = arith.constant dense<0.000000e+00> : vector<1x8xf32>
    %161 = tpu.matmul %159, %160, %cst_63 {dimension_numbers = #tpu.dot_dimension_numbers<[0], [1], [1], [0], [0, 1, 1, 0], [], []>} : vector<32x1xbf16>, vector<8x32xbf16>, vector<1x8xf32> -> vector<1x8xf32>
    %c32_64 = arith.constant 32 : index
    %c1792_65 = arith.constant 1792 : index
    %162 = vector.load %arg3[%c32_64, %c1792_65] : memref<33x1920xbf16, #tpu.memory_space<vmem>>, vector<1x1xbf16>
    %163 = arith.extf %162 : vector<1x1xbf16> to vector<1x1xf32>
    %164 = vector.broadcast %163 : vector<1x1xf32> to vector<1x8xf32>
    %165 = arith.addf %161, %164 : vector<1x8xf32>
    %cst_66 = arith.constant 0.000000e+00 : f32
    %166 = vector.broadcast %cst_66 : f32 to vector<1x120xf32>
    %167 = tpu.concatenate %165, %166 in 1 : vector<1x8xf32>, vector<1x120xf32> -> vector<1x128xf32>
    %c0_67 = arith.constant 0 : index
    %c0_68 = arith.constant 0 : index
    %168 = vector.load %arg6[%c0_67, %c0_68] : memref<1x128xf32, #tpu.memory_space<vmem>>, vector<1x128xf32>
    tpu.vector_store %arg6[%c0_67, %c0_68], %167 {strides = array<i32>} : memref<1x128xf32, #tpu.memory_space<vmem>>, vector<1x128xf32>,
    return
  }
}

</mosaic_0001>

<llo_original>
// kernel: regnet_forward.1
$region0: #{regnet_forward.1}
  #allocation0 [shape = 'u32[]', space=smem, size = 0x4, offset = 0x4, fixed_abs, tag = 'smem constant byte address 0x4 - core index']
  #allocation1 [shape = 'u32[144,128]{1,0:T(1,128)}', space=vmem, size = 0x12000, scoped, tag = 'internal scratch']
  %s0 = inlined_call_operand.vmem [shape: f32[16,8], index: 0, kind: input, shape index: {}]
  %s1 = inlined_call_operand.vmem [shape: s32[2,40], index: 1, kind: input, shape index: {}]
  %s2 = inlined_call_operand.vmem [shape: s32[8,2], index: 2, kind: input, shape index: {}]
  %s3 = inlined_call_operand.hbm [shape: bf16[33,1920], index: 3, kind: input, shape index: {}]
  %s4 = inlined_call_operand.hbm [shape: f32[16,16], index: 4, kind: output, shape index: {0}]
  %s5 = inlined_call_operand.vmem [shape: f32[16,256], index: 5, kind: output, shape index: {1}]
  %s6 = inlined_call_operand.vmem [shape: f32[1,128], index: 6, kind: output, shape index: {2}]
  %s7 = inlined_call_operand.hbm [shape: f32[1,1], index: 7, kind: output, shape index: {3}]
  %8 = xla_tuple %s4, %s5, %s6, %s7
  %s9 = sld [smem:[#allocation0]]
  $region54: #{regnet_forward.1} parent=0
    _
  %s11 = ssub.s32 1, %s9
  %s12 = scalar_select 0, %s11, %s9
  $region1: #{regnet_forward.1} parent=0
    #allocation2 [shape = 'u8[153600]{0}', space=vmem, size = 0x25800, scoped, tag = 'input window, operand 3, single buffered']
    #allocation3 [shape = 's32[1]{0}', space=sflag, size = 0x4, scoped, tag = 'scoped memory for regnet_forward.1']
    #allocation4 [shape = 's32[1]{0}', space=sflag, size = 0x4, scoped, tag = 'scoped memory for regnet_forward.1']
    #allocation5 [shape = 's32[1]{0}', space=sflag, size = 0x4, scoped, tag = 'scoped memory for regnet_forward.1']
    #allocation6 [shape = 'u8[8192]{0}', space=vmem, size = 0x2000, scoped, tag = 'output window, operand 0, single buffered']
    #allocation7 [shape = 'u8[512]{0}', space=smem, size = 0x200, scoped, tag = 'output window, operand 3, single buffered']
    %13 = vsyncpa [#allocation3], 0
    %14 = vsyncpa [#allocation4], 0
    %15 = vsyncpa [#allocation5], 0
    // Predicated region
    $region2: #{regnet_forward.1} parent=1 // pred_check
      _
    $region3: #{regnet_forward.1} parent=1 // pred_check_branch
      %17 = sbr.rel (0) target = $region5
    $region4: #{regnet_forward.1} parent=1 // pred_region
      _
    $region5: #{regnet_forward.1} parent=1 // pred_fallthru
      _
    // Predicated region
    $region6: #{regnet_forward.1} parent=1 // pred_check
      _
    $region7: #{regnet_forward.1} parent=1 // pred_check_branch
      %19 = sbr.rel (0) target = $region9
    $region8: #{regnet_forward.1} parent=1 // pred_region
      _
    $region9: #{regnet_forward.1} parent=1 // pred_fallthru
      _
    // Predicated region
    $region10: #{regnet_forward.1} parent=1 // pred_check
      _
    $region11: #{regnet_forward.1} parent=1 // pred_check_branch
      %21 = sbr.rel (0) target = $region13
    $region12: #{regnet_forward.1} parent=1 // pred_region
      _
    $region13: #{regnet_forward.1} parent=1 // pred_fallthru
      _
    // Predicated region
    $region14: #{regnet_forward.1} parent=1 // pred_check
      _
    $region15: #{regnet_forward.1} parent=1 // pred_check_branch
      %23 = sbr.rel (0) target = $region17
    $region16: #{regnet_forward.1} parent=1 // pred_region
      %s25 = ssub.s32 4800, 4800
      %26 = vsyncadd [#allocation3], %s25
      %s27 = sshll.u32 [#allocation2], 4
      %s28 = int_to_ptr.vmem [resolvable:$true] %s27
      %33 = dma.hbm_to_vmem [thread:$0]  %s3, 4800, %s28, [#allocation3], 960, 960, 60
    $region17: #{regnet_forward.1} parent=1 // pred_fallthru
      _
    // Predicated region
    $region18: #{regnet_forward.1} parent=1 // pred_check
      _
    $region19: #{regnet_forward.1} parent=1 // pred_check_branch
      %35 = sbr.rel (0) target = $region21
    $region20: #{regnet_forward.1} parent=1 // pred_region
      %36 = dma.done [#allocation3], 4800
    $region21: #{regnet_forward.1} parent=1 // pred_fallthru
      _
    %v38 = vld [vmem:[%s0] sm:$0xff]
    %v39 = vld [vmem:[%s0 + $0x8] sm:$0xff]
    %v40 = vld [vmem:[%s1] sm:$0x3]
    %v41 = vlaneseq
    %v42 = vshrl.u32 %v41, 7
    %v43 = vadd.s32 %v42, 8
    %v44 = vlaneseq
    %v45 = vshrl.u32 %v44, 7
    %v46 = vsub.s32 1, %v45
    %v47 = vrot.slane %v40, %v46
    %vm48 = vcmp.eq.s32.totalorder %v42, %v47
    %vm49 = vcmp.eq.s32.totalorder %v43, %v47
    %v50 = vsel %vm48, 1, 0
    %v51 = vsel %vm49, 1, 0
    %v52 = vcvt.s32.f32 %v50
    %v53 = vcvt.s32.f32 %v51
    %v54 = vpack.c.bf16 %v53, %v52
    %v55 = vlaneseq
    %v56 = vshrl.u32 %v55, 7
    %v57 = vsub.s32 0, %v56
    %v58 = vrot.slane %v40, %v57
    %vm59 = vcmp.eq.s32.totalorder %v42, %v58
    %vm60 = vcmp.eq.s32.totalorder %v43, %v58
    %v61 = vsel %vm59, 1, 0
    %v62 = vsel %vm60, 1, 0
    %v63 = vcvt.s32.f32 %v61
    %v64 = vcvt.s32.f32 %v62
    %v65 = vpack.c.bf16 %v64, %v63
    %vm66 = vcmask 326656
    %v68 = vsel %vm66, %v54, 0
    %v71 = vsel %vm66, %v65, 0
    %73 = vmatprep.subr.bf16.mxu0 0
    %74 = vmatpush1.bf16.xpose.msra.mxu0 0
    %75 = vmatprep.subr.bf16.mxu0 0
    %76 = vmatpush1.bf16.xpose.msra.mxu0 0
    %77 = vmatprep.subr.bf16.mxu0 0
    %78 = vmatpush1.bf16.xpose.msra.mxu0 0
    %79 = vmatprep.subr.bf16.mxu0 0
    %80 = vmatpush1.bf16.xpose.msra.mxu0 0
    %81 = vmatprep.subr.bf16.mxu0 0
    %82 = vmatpush1.bf16.xpose.msra.mxu0 0
    %83 = vmatprep.subr.bf16.mxu0 0
    %84 = vmatpush1.bf16.xpose.msra.mxu0 0
    %85 = vmatprep.subr.bf16.mxu0 0
    %86 = vmatpush1.bf16.xpose.msra.mxu0 0
    %87 = vmatprep.subr.bf16.mxu0 0
    %88 = vmatpush1.bf16.xpose.msra.mxu0 %v71
    %89 = vmatprep.subr.bf16.mxu0 0
    %90 = vmatpush2.bf16.xpose.msra.mxu0 0
    %91 = vmatprep.subr.bf16.mxu0 0
    %92 = vmatpush2.bf16.xpose.msra.mxu0 0
    %93 = vmatprep.subr.bf16.mxu0 0
    %94 = vmatpush2.bf16.xpose.msra.mxu0 0
    %95 = vmatprep.subr.bf16.mxu0 0
    %96 = vmatpush2.bf16.xpose.msra.mxu0 0
    %97 = vmatprep.subr.bf16.mxu0 0
    %98 = vmatpush2.bf16.xpose.msra.mxu0 0
    %99 = vmatprep.subr.bf16.mxu0 0
    %100 = vmatpush2.bf16.xpose.msra.mxu0 0
    %101 = vmatprep.subr.bf16.mxu0 0
    %102 = vmatpush2.bf16.xpose.msra.mxu0 0
    %103 = vmatprep.subr.bf16.mxu0 0
    %104 = vmatpush2.bf16.xpose.msra.mxu0 0
    %105 = vmatprep.mubr.bf16.mxu0 0
    %106 = vmatmul.mubr.bf16.gmra.mxu0 %v68
    %v107 = vpop.f32.mrf.mxu0
    %v108 = vadd.f32 0.0, %v107
    %v109 = vpop.f32.mrf.mxu0
    %v110 = vpop.f32.mrf.mxu0
    %v111 = vadd.f32 0.0, %v110
    %v112 = vpop.f32.mrf.mxu0
    %113 = vdwg.mxu0
    %v114 = vmin.f32 %v108, 1.0
    %v115 = vmin.f32 %v111, 1.0
    %vm116 = vcmask 130048
    %v117 = vsel %vm116, %v114, 0.0
    %118 = vadd.xlane.f32.xlu0 %v117
    %v119 = vpop.xlane.xlu0 %118
    %v120 = vsel %vm116, %v115, 0.0
    %121 = vadd.xlane.f32.xlu0 %v120
    %v122 = vpop.xlane.xlu0 %121
    %v123 = vmax.f32 %v119, 1.0
    %v124 = vmax.f32 %v122, 1.0
    %v125 = vrcp.pop %v123
    %v126 = vmul.f32 %v114, %v125
    %v127 = vrcp.pop %v124
    %v128 = vmul.f32 %v115, %v127
    %v129 = vpack.c.bf16 %v128, %v126
    %v130 = vld [vmem:[#allocation2] sm:$0xff]
    %v131 = vpack.c.bf16 %v39, %v38
    %v133 = vunpack.c.l.b16 %v130
    %v134 = vunpack.c.h.b16 %v130
    %v135 = vpack.c.b16 %v133, %v133
    %v136 = vpack.c.b16 %v134, %v134
    %vm137 = vcmask 64512
    %v139 = vsel %vm137, %v131, 0
    %vm141 = vcmask 1043456
    %v143 = vsel %vm141, %v135, 0
    %v146 = vsel %vm141, %v136, 0
    %148 = vmatprep.subr.bf16.mxu0 0
    %149 = vmatpush1.bf16.msra.mxu0 0
    %150 = vmatprep.subr.bf16.mxu0 0
    %151 = vmatpush1.bf16.msra.mxu0 0
    %152 = vmatprep.subr.bf16.mxu0 0
    %153 = vmatpush1.bf16.msra.mxu0 0
    %154 = vmatprep.subr.bf16.mxu0 0
    %155 = vmatpush1.bf16.msra.mxu0 0
    %156 = vmatprep.subr.bf16.mxu0 0
    %157 = vmatpush1.bf16.msra.mxu0 0
    %158 = vmatprep.subr.bf16.mxu0 0
    %159 = vmatpush1.bf16.msra.mxu0 0
    %160 = vmatprep.subr.bf16.mxu0 0
    %161 = vmatpush1.bf16.msra.mxu0 0
    %162 = vmatprep.subr.bf16.mxu0 %v146
    %163 = vmatpush1.bf16.msra.mxu0 %v143
    %164 = vmatprep.subr.bf16.mxu0 0
    %165 = vmatpush2.bf16.msra.mxu0 0
    %166 = vmatprep.subr.bf16.mxu0 0
    %167 = vmatpush2.bf16.msra.mxu0 0
    %168 = vmatprep.subr.bf16.mxu0 0
    %169 = vmatpush2.bf16.msra.mxu0 0
    %170 = vmatprep.subr.bf16.mxu0 0
    %171 = vmatpush2.bf16.msra.mxu0 0
    %172 = vmatprep.subr.bf16.mxu0 0
    %173 = vmatpush2.bf16.msra.mxu0 0
    %174 = vmatprep.subr.bf16.mxu0 0
    %175 = vmatpush2.bf16.msra.mxu0 0
    %176 = vmatprep.subr.bf16.mxu0 0
    %177 = vmatpush2.bf16.msra.mxu0 0
    %178 = vmatprep.subr.bf16.mxu0 0
    %179 = vmatpush2.bf16.msra.mxu0 0
    %180 = vmatprep.mubr.bf16.mxu0 0
    %181 = vmatmul.mubr.bf16.gmra.mxu0 %v139
    %v182 = vpop.f32.mrf.mxu0
    %v183 = vadd.f32 0.0, %v182
    %v184 = vpop.f32.mrf.mxu0
    %v185 = vadd.f32 0.0, %v184
    %v186 = vpop.f32.mrf.mxu0
    %v187 = vadd.f32 0.0, %v186
    %v188 = vpop.f32.mrf.mxu0
    %v189 = vadd.f32 0.0, %v188
    %190 = vdwg.mxu0
    %v191 = vpack.c.bf16 %v189, %v185
    %v193 = vsel %vm116, %v129, 0
    %195 = vmatprep.subr.bf16.mxu0 0
    %196 = vmatpush1.bf16.msra.mxu0 0
    %197 = vmatprep.subr.bf16.mxu0 0
    %198 = vmatpush1.bf16.msra.mxu0 0
    %199 = vmatprep.subr.bf16.mxu0 0
    %200 = vmatpush1.bf16.msra.mxu0 0
    %201 = vmatprep.subr.bf16.mxu0 0
    %202 = vmatpush1.bf16.msra.mxu0 0
    %203 = vmatprep.subr.bf16.mxu0 0
    %204 = vmatpush1.bf16.msra.mxu0 0
    %205 = vmatprep.subr.bf16.mxu0 0
    %206 = vmatpush1.bf16.msra.mxu0 0
    %207 = vmatprep.subr.bf16.mxu0 0
    %208 = vmatpush1.bf16.msra.mxu0 0
    %209 = vmatprep.subr.bf16.mxu0 0
    %210 = vmatpush1.bf16.msra.mxu0 %v191
    %211 = vmatprep.subr.bf16.mxu0 0
    %212 = vmatpush2.bf16.msra.mxu0 0
    %213 = vmatprep.subr.bf16.mxu0 0
    %214 = vmatpush2.bf16.msra.mxu0 0
    %215 = vmatprep.subr.bf16.mxu0 0
    %216 = vmatpush2.bf16.msra.mxu0 0
    %217 = vmatprep.subr.bf16.mxu0 0
    %218 = vmatpush2.bf16.msra.mxu0 0
    %219 = vmatprep.subr.bf16.mxu0 0
    %220 = vmatpush2.bf16.msra.mxu0 0
    %221 = vmatprep.subr.bf16.mxu0 0
    %222 = vmatpush2.bf16.msra.mxu0 0
    %223 = vmatprep.subr.bf16.mxu0 0
    %224 = vmatpush2.bf16.msra.mxu0 0
    %225 = vmatprep.subr.bf16.mxu0 0
    %226 = vmatpush2.bf16.msra.mxu0 0
    %227 = vmatprep.mubr.bf16.mxu0 0
    %228 = vmatmul.mubr.bf16.gmra.mxu0 %v193
    %v229 = vpop.f32.mrf.mxu0
    %v230 = vadd.f32 0.0, %v229
    %v231 = vpop.f32.mrf.mxu0
    %v232 = vpop.f32.mrf.mxu0
    %v233 = vadd.f32 0.0, %v232
    %v234 = vpop.f32.mrf.mxu0
    %235 = vdwg.mxu0
    %v236 = vadd.f32 %v183, %v230
    %v237 = vadd.f32 %v187, %v233
    %v238 = vld [vmem:[#allocation2 + $0xf0] sm:$0x1]
    %v239 = vunpack.c.l.bf16 %v238
    %v240 = vlaneseq
    %v241 = vshrl.u32 %v240, 7
    %v242 = vsub.s32 0, %v241
    %v243 = vrot.slane %v239, %v242
    %v244 = vadd.f32 %v236, %v243
    %v245 = vadd.f32 %v237, %v243
    %v246 = vmax.f32 %v244, 0.0
    %v247 = vmax.f32 %v245, 0.0
    %v248 = vld [vmem:[#allocation2 + $0x8] sm:$0xff]
    %v249 = vld [vmem:[#allocation2 + $0x44] sm:$0xff]
    %v250 = vld [vmem:[#allocation2 + $0x80] sm:$0xff]
    %v251 = vld [vmem:[#allocation2 + $0xbc] sm:$0xff]
    %v252 = vpack.c.bf16 %v247, %v246
    %v257 = vunpack.c.l.b16 %v248
    %v258 = vunpack.c.h.b16 %v248
    %v259 = vunpack.c.l.b16 %v249
    %v260 = vunpack.c.h.b16 %v249
    %v261 = vunpack.c.l.b16 %v250
    %v262 = vunpack.c.h.b16 %v250
    %v263 = vunpack.c.l.b16 %v251
    %v264 = vunpack.c.h.b16 %v251
    %v265 = vpack.c.b16 %v259, %v257
    %v266 = vpack.c.b16 %v260, %v258
    %v267 = vpack.c.b16 %v263, %v261
    %v268 = vpack.c.b16 %v264, %v262
    %vm273 = vcmask 261120
    %v275 = vsel %vm273, %v252, 0
    %277 = vmatprep.subr.bf16.mxu0 0
    %278 = vmatpush1.bf16.msra.mxu0 0
    %279 = vmatprep.subr.bf16.mxu0 0
    %280 = vmatpush1.bf16.msra.mxu0 0
    %281 = vmatprep.subr.bf16.mxu0 0
    %282 = vmatpush1.bf16.msra.mxu0 0
    %283 = vmatprep.subr.bf16.mxu0 0
    %284 = vmatpush1.bf16.msra.mxu0 0
    %285 = vmatprep.subr.bf16.mxu0 0
    %286 = vmatpush1.bf16.msra.mxu0 0
    %287 = vmatprep.subr.bf16.mxu0 0
    %288 = vmatpush1.bf16.msra.mxu0 0
    %289 = vmatprep.subr.bf16.mxu0 %v268
    %290 = vmatpush1.bf16.msra.mxu0 %v267
    %291 = vmatprep.subr.bf16.mxu0 %v266
    %292 = vmatpush1.bf16.msra.mxu0 %v265
    %293 = vmatprep.subr.bf16.mxu0 0
    %294 = vmatpush2.bf16.msra.mxu0 0
    %295 = vmatprep.subr.bf16.mxu0 0
    %296 = vmatpush2.bf16.msra.mxu0 0
    %297 = vmatprep.subr.bf16.mxu0 0
    %298 = vmatpush2.bf16.msra.mxu0 0
    %299 = vmatprep.subr.bf16.mxu0 0
    %300 = vmatpush2.bf16.msra.mxu0 0
    %301 = vmatprep.subr.bf16.mxu0 0
    %302 = vmatpush2.bf16.msra.mxu0 0
    %303 = vmatprep.subr.bf16.mxu0 0
    %304 = vmatpush2.bf16.msra.mxu0 0
    %305 = vmatprep.subr.bf16.mxu0 0
    %306 = vmatpush2.bf16.msra.mxu0 0
    %307 = vmatprep.subr.bf16.mxu0 0
    %308 = vmatpush2.bf16.msra.mxu0 0
    %309 = vmatprep.mubr.bf16.mxu0 0
    %310 = vmatmul.mubr.bf16.gmra.mxu0 %v275
    %v311 = vpop.f32.mrf.mxu0
    %v312 = vadd.f32 0.0, %v311
    %v313 = vpop.f32.mrf.mxu0
    %v314 = vadd.f32 0.0, %v313
    %v315 = vpop.f32.mrf.mxu0
    %v316 = vadd.f32 0.0, %v315
    %v317 = vpop.f32.mrf.mxu0
    %v318 = vadd.f32 0.0, %v317
    %319 = vdwg.mxu0
    %v320 = vpack.c.bf16 %v318, %v314
    %321 = vmatprep.subr.bf16.mxu0 0
    %322 = vmatpush1.bf16.msra.mxu0 0
    %323 = vmatprep.subr.bf16.mxu0 0
    %324 = vmatpush1.bf16.msra.mxu0 0
    %325 = vmatprep.subr.bf16.mxu0 0
    %326 = vmatpush1.bf16.msra.mxu0 0
    %327 = vmatprep.subr.bf16.mxu0 0
    %328 = vmatpush1.bf16.msra.mxu0 0
    %329 = vmatprep.subr.bf16.mxu0 0
    %330 = vmatpush1.bf16.msra.mxu0 0
    %331 = vmatprep.subr.bf16.mxu0 0
    %332 = vmatpush1.bf16.msra.mxu0 0
    %333 = vmatprep.subr.bf16.mxu0 0
    %334 = vmatpush1.bf16.msra.mxu0 0
    %335 = vmatprep.subr.bf16.mxu0 0
    %336 = vmatpush1.bf16.msra.mxu0 %v320
    %337 = vmatprep.subr.bf16.mxu0 0
    %338 = vmatpush2.bf16.msra.mxu0 0
    %339 = vmatprep.subr.bf16.mxu0 0
    %340 = vmatpush2.bf16.msra.mxu0 0
    %341 = vmatprep.subr.bf16.mxu0 0
    %342 = vmatpush2.bf16.msra.mxu0 0
    %343 = vmatprep.subr.bf16.mxu0 0
    %344 = vmatpush2.bf16.msra.mxu0 0
    %345 = vmatprep.subr.bf16.mxu0 0
    %346 = vmatpush2.bf16.msra.mxu0 0
    %347 = vmatprep.subr.bf16.mxu0 0
    %348 = vmatpush2.bf16.msra.mxu0 0
    %349 = vmatprep.subr.bf16.mxu0 0
    %350 = vmatpush2.bf16.msra.mxu0 0
    %351 = vmatprep.subr.bf16.mxu0 0
    %352 = vmatpush2.bf16.msra.mxu0 0
    %353 = vmatprep.mubr.bf16.mxu0 0
    %354 = vmatmul.mubr.bf16.gmra.mxu0 %v193
    %v355 = vpop.f32.mrf.mxu0
    %v356 = vadd.f32 0.0, %v355
    %v357 = vpop.f32.mrf.mxu0
    %v358 = vpop.f32.mrf.mxu0
    %v359 = vadd.f32 0.0, %v358
    %v360 = vpop.f32.mrf.mxu0
    %361 = vdwg.mxu0
    %v362 = vadd.f32 %v312, %v356
    %v363 = vadd.f32 %v316, %v359
    %v364 = vld [vmem:[#allocation2 + $0xf8] sm:$0x1]
    %v365 = vunpack.c.l.bf16 %v364
    %v366 = vlaneseq
    %v367 = vshrl.u32 %v366, 7
    %v368 = vsub.s32 0, %v367
    %v369 = vrot.slane %v365, %v368
    %v370 = vadd.f32 %v362, %v369
    %v371 = vadd.f32 %v363, %v369
    %v372 = vld [vmem:[#allocation2 + $0x10] sm:$0xff]
    %v373 = vld [vmem:[#allocation2 + $0x18] sm:$0xf]
    %v374 = vld [vmem:[#allocation2 + $0x4c] sm:$0xff]
    %v375 = vld [vmem:[#allocation2 + $0x54] sm:$0xf]
    %v376 = vld [vmem:[#allocation2 + $0x88] sm:$0xff]
    %v377 = vld [vmem:[#allocation2 + $0x90] sm:$0xf]
    %v378 = vld [vmem:[#allocation2 + $0xc4] sm:$0xff]
    %v379 = vld [vmem:[#allocation2 + $0xcc] sm:$0xf]
    %v380 = vpack.c.bf16 %v371, %v370
    %v381 = vld [vmem:[#allocation2 + $0x100] sm:$0x11]
    %v382 = vld [vmem:[#allocation2 + $0x108] sm:$0x1]
    %v383 = vunpack.c.l.bf16 %v381
    %v384 = vunpack.c.h.bf16 %v381
    %v385 = vunpack.c.l.bf16 %v382
    %v386 = vlaneseq
    %v387 = vshrl.u32 %v386, 7
    %v388 = vsub.s32 0, %v387
    %v389 = vrot.slane %v383, %v388
    %v390 = vlaneseq
    %v391 = vshrl.u32 %v390, 7
    %v392 = vsub.s32 0, %v391
    %v393 = vrot.slane %v384, %v392
    %v394 = vlaneseq
    %v395 = vshrl.u32 %v394, 7
    %v396 = vsub.s32 0, %v395
    %v397 = vrot.slane %v385, %v396
    %v406 = vunpack.c.l.b16 %v372
    %v407 = vunpack.c.h.b16 %v372
    %v408 = vunpack.c.l.b16 %v373
    %v409 = vunpack.c.l.b16 %v374
    %v410 = vunpack.c.h.b16 %v374
    %v411 = vunpack.c.l.b16 %v375
    %v412 = vunpack.c.l.b16 %v376
    %v413 = vunpack.c.h.b16 %v376
    %v414 = vunpack.c.l.b16 %v377
    %v415 = vunpack.c.l.b16 %v378
    %v416 = vunpack.c.h.b16 %v378
    %v417 = vunpack.c.l.b16 %v379
    %v418 = vpack.c.b16 %v409, %v406
    %v419 = vpack.c.b16 %v410, %v407
    %v420 = vpack.c.b16 %v411, %v408
    %v421 = vpack.c.b16 %v415, %v412
    %v422 = vpack.c.b16 %v416, %v413
    %v423 = vpack.c.b16 %v417, %v414
    %v431 = vsel %vm273, %v380, 0
    %433 = vmatprep.subr.bf16.mxu0 0
    %434 = vmatpush1.bf16.msra.mxu0 0
    %435 = vmatprep.subr.bf16.mxu0 0
    %436 = vmatpush1.bf16.msra.mxu0 0
    %437 = vmatprep.subr.bf16.mxu0 0
    %438 = vmatpush1.bf16.msra.mxu0 0
    %439 = vmatprep.subr.bf16.mxu0 0
    %440 = vmatpush1.bf16.msra.mxu0 0
    %441 = vmatprep.subr.bf16.mxu0 0
    %442 = vmatpush1.bf16.msra.mxu0 0
    %443 = vmatprep.subr.bf16.mxu0 0
    %444 = vmatpush1.bf16.msra.mxu0 0
    %445 = vmatprep.subr.bf16.mxu0 %v422
    %446 = vmatpush1.bf16.msra.mxu0 %v421
    %447 = vmatprep.subr.bf16.mxu0 %v419
    %448 = vmatpush1.bf16.msra.mxu0 %v418
    %449 = vmatprep.subr.bf16.mxu0 0
    %450 = vmatpush2.bf16.msra.mxu0 0
    %451 = vmatprep.subr.bf16.mxu0 0
    %452 = vmatpush2.bf16.msra.mxu0 0
    %453 = vmatprep.subr.bf16.mxu0 0
    %454 = vmatpush2.bf16.msra.mxu0 0
    %455 = vmatprep.subr.bf16.mxu0 0
    %456 = vmatpush2.bf16.msra.mxu0 0
    %457 = vmatprep.subr.bf16.mxu0 0
    %458 = vmatpush2.bf16.msra.mxu0 0
    %459 = vmatprep.subr.bf16.mxu0 0
    %460 = vmatpush2.bf16.msra.mxu0 0
    %461 = vmatprep.subr.bf16.mxu0 0
    %462 = vmatpush2.bf16.msra.mxu0 0
    %463 = vmatprep.subr.bf16.mxu0 0
    %464 = vmatpush2.bf16.msra.mxu0 0
    %465 = vmatprep.mubr.bf16.mxu0 0
    %466 = vmatmul.mubr.bf16.gmra.mxu0 %v431
    %v467 = vpop.f32.mrf.mxu0
    %v468 = vadd.f32 %v389, %v467
    %v469 = vpop.f32.mrf.mxu0
    %v470 = vadd.f32 %v393, %v469
    %v471 = vpop.f32.mrf.mxu0
    %v472 = vadd.f32 %v389, %v471
    %v473 = vpop.f32.mrf.mxu0
    %v474 = vadd.f32 %v393, %v473
    %475 = vdwg.mxu0
    %476 = vmatprep.subr.bf16.mxu0 0
    %477 = vmatpush1.bf16.msra.mxu0 0
    %478 = vmatprep.subr.bf16.mxu0 0
    %479 = vmatpush1.bf16.msra.mxu0 0
    %480 = vmatprep.subr.bf16.mxu0 0
    %481 = vmatpush1.bf16.msra.mxu0 0
    %482 = vmatprep.subr.bf16.mxu0 0
    %483 = vmatpush1.bf16.msra.mxu0 0
    %484 = vmatprep.subr.bf16.mxu0 0
    %485 = vmatpush1.bf16.msra.mxu0 0
    %486 = vmatprep.subr.bf16.mxu0 0
    %487 = vmatpush1.bf16.msra.mxu0 0
    %488 = vmatprep.subr.bf16.mxu0 0
    %489 = vmatpush1.bf16.msra.mxu0 %v423
    %490 = vmatprep.subr.bf16.mxu0 0
    %491 = vmatpush1.bf16.msra.mxu0 %v420
    %492 = vmatprep.subr.bf16.mxu0 0
    %493 = vmatpush2.bf16.msra.mxu0 0
    %494 = vmatprep.subr.bf16.mxu0 0
    %495 = vmatpush2.bf16.msra.mxu0 0
    %496 = vmatprep.subr.bf16.mxu0 0
    %497 = vmatpush2.bf16.msra.mxu0 0
    %498 = vmatprep.subr.bf16.mxu0 0
    %499 = vmatpush2.bf16.msra.mxu0 0
    %500 = vmatprep.subr.bf16.mxu0 0
    %501 = vmatpush2.bf16.msra.mxu0 0
    %502 = vmatprep.subr.bf16.mxu0 0
    %503 = vmatpush2.bf16.msra.mxu0 0
    %504 = vmatprep.subr.bf16.mxu0 0
    %505 = vmatpush2.bf16.msra.mxu0 0
    %506 = vmatprep.subr.bf16.mxu0 0
    %507 = vmatpush2.bf16.msra.mxu0 0
    %508 = vmatprep.mubr.bf16.mxu0 0
    %509 = vmatmul.mubr.bf16.gmra.mxu0 %v431
    %v510 = vpop.f32.mrf.mxu0
    %v511 = vadd.f32 %v397, %v510
    %v512 = vpop.f32.mrf.mxu0
    %v513 = vpop.f32.mrf.mxu0
    %v514 = vadd.f32 %v397, %v513
    %v515 = vpop.f32.mrf.mxu0
    %516 = vdwg.mxu0
    %v517 = vpack.c.bf16 %v472, %v468
    %v518 = vpack.c.bf16 %v474, %v470
    %v520 = vsel %vm273, %v517, 0
    %v523 = vsel %vm273, %v518, 0
    %525 = vmatprep.subr.bf16.mxu0 0
    %526 = vmatpush1.bf16.xpose.msra.mxu0 0
    %527 = vmatprep.subr.bf16.mxu0 0
    %528 = vmatpush1.bf16.xpose.msra.mxu0 0
    %529 = vmatprep.subr.bf16.mxu0 0
    %530 = vmatpush1.bf16.xpose.msra.mxu0 0
    %531 = vmatprep.subr.bf16.mxu0 0
    %532 = vmatpush1.bf16.xpose.msra.mxu0 0
    %533 = vmatprep.subr.bf16.mxu0 0
    %534 = vmatpush1.bf16.xpose.msra.mxu0 0
    %535 = vmatprep.subr.bf16.mxu0 0
    %536 = vmatpush1.bf16.xpose.msra.mxu0 0
    %537 = vmatprep.subr.bf16.mxu0 0
    %538 = vmatpush1.bf16.xpose.msra.mxu0 0
    %539 = vmatprep.subr.bf16.mxu0 0
    %540 = vmatpush1.bf16.xpose.msra.mxu0 %v523
    %541 = vmatprep.subr.bf16.mxu0 0
    %542 = vmatpush2.bf16.xpose.msra.mxu0 0
    %543 = vmatprep.subr.bf16.mxu0 0
    %544 = vmatpush2.bf16.xpose.msra.mxu0 0
    %545 = vmatprep.subr.bf16.mxu0 0
    %546 = vmatpush2.bf16.xpose.msra.mxu0 0
    %547 = vmatprep.subr.bf16.mxu0 0
    %548 = vmatpush2.bf16.xpose.msra.mxu0 0
    %549 = vmatprep.subr.bf16.mxu0 0
    %550 = vmatpush2.bf16.xpose.msra.mxu0 0
    %551 = vmatprep.subr.bf16.mxu0 0
    %552 = vmatpush2.bf16.xpose.msra.mxu0 0
    %553 = vmatprep.subr.bf16.mxu0 0
    %554 = vmatpush2.bf16.xpose.msra.mxu0 0
    %555 = vmatprep.subr.bf16.mxu0 0
    %556 = vmatpush2.bf16.xpose.msra.mxu0 0
    %557 = vmatprep.mubr.bf16.mxu0 0
    %558 = vmatmul.mubr.bf16.gmra.mxu0 %v520
    %v559 = vpop.f32.mrf.mxu0
    %v560 = vadd.f32 0.0, %v559
    %v561 = vpop.f32.mrf.mxu0
    %v562 = vpop.f32.mrf.mxu0
    %v563 = vadd.f32 0.0, %v562
    %v564 = vpop.f32.mrf.mxu0
    %565 = vdwg.mxu0
    %v566 = vmul.f32 %v560, 0.17677669
    %v567 = vmul.f32 %v563, 0.17677669
    %v568 = vsel %vm116, %v566, -inf
    %569 = vmax.xlane.f32.xlu0 %v568
    %v570 = vpop.xlane.xlu0 %569
    %v571 = vsel %vm116, %v567, -inf
    %572 = vmax.xlane.f32.xlu0 %v571
    %v573 = vpop.xlane.xlu0 %572
    %v574 = vsub.f32 %v566, %v570
    %v575 = vsub.f32 %v567, %v573
    %v576 = vmul.f32 %v574, 1.442695
    %v577 = vpow.pop %v576
    %v578 = vmul.f32 %v575, 1.442695
    %v579 = vpow.pop %v578
    %v580 = vsel %vm116, %v577, 0.0
    %581 = vadd.xlane.f32.xlu0 %v580
    %v582 = vpop.xlane.xlu0 %581
    %v583 = vsel %vm116, %v579, 0.0
    %584 = vadd.xlane.f32.xlu0 %v583
    %v585 = vpop.xlane.xlu0 %584
    %v586 = vrcp.pop %v582
    %v587 = vmul.f32 %v577, %v586
    %v588 = vrcp.pop %v585
    %v589 = vmul.f32 %v579, %v588
    %590 = vst.msk [vmem:[#allocation6] sm:$0xff] %vm116, %v587
    %591 = vst.msk [vmem:[#allocation6 + $0x8] sm:$0xff] %vm116, %v589
    %v592 = vlog2.pop %v582
    %v593 = vmul.f32 %v592, 0.6931472
    %v594 = vlog2.pop %v585
    %v595 = vmul.f32 %v594, 0.6931472
    %v596 = vmul.f32 %v577, %v574
    %v597 = vmul.f32 %v579, %v575
    %v598 = vsel %vm116, %v596, 0.0
    %599 = vadd.xlane.f32.xlu0 %v598
    %v600 = vpop.xlane.xlu0 %599
    %v601 = vsel %vm116, %v597, 0.0
    %602 = vadd.xlane.f32.xlu0 %v601
    %v603 = vpop.xlane.xlu0 %602
    %v604 = vmul.f32 %v600, %v586
    %v605 = vmul.f32 %v603, %v588
    %v606 = vsub.f32 %v593, %v604
    %v607 = vsub.f32 %v595, %v605
    %vm608 = vcmask 7168
    %v609 = vsel %vm608, %v606, 0.0
    %v610 = vsel %vm608, %v607, 0.0
    %v611 = vadd.f32 %v609, %v610
    %612 = vadd.xlane.f32.xlu0 %v611
    %v613 = vpop.xlane.xlu0 %612
    %v614 = vrot.slane %v613, 4
    %v615 = vadd.f32 %v613, %v614
    %v616 = vrot.slane %v615, 2
    %v617 = vadd.f32 %v615, %v616
    %v618 = vrot.slane %v617, 1
    %v619 = vadd.f32 %v617, %v618
    %s620 = vtos %v619
    %s621 = smul.f32 %s620, 0.0625
    %s622 = scalar_lea.smem [#allocation7], 0
    %623 = sst [smem:[%s622]] %s621
    %v624 = vpack.c.bf16 %v589, %v587
    %v625 = vpack.c.bf16 %v514, %v511
    %v627 = vsel %vm116, %v624, 0
    %629 = vmatprep.subr.bf16.mxu0 0
    %630 = vmatpush1.bf16.msra.mxu0 0
    %631 = vmatprep.subr.bf16.mxu0 0
    %632 = vmatpush1.bf16.msra.mxu0 0
    %633 = vmatprep.subr.bf16.mxu0 0
    %634 = vmatpush1.bf16.msra.mxu0 0
    %635 = vmatprep.subr.bf16.mxu0 0
    %636 = vmatpush1.bf16.msra.mxu0 0
    %637 = vmatprep.subr.bf16.mxu0 0
    %638 = vmatpush1.bf16.msra.mxu0 0
    %639 = vmatprep.subr.bf16.mxu0 0
    %640 = vmatpush1.bf16.msra.mxu0 0
    %641 = vmatprep.subr.bf16.mxu0 0
    %642 = vmatpush1.bf16.msra.mxu0 0
    %643 = vmatprep.subr.bf16.mxu0 0
    %644 = vmatpush1.bf16.msra.mxu0 %v625
    %645 = vmatprep.subr.bf16.mxu0 0
    %646 = vmatpush2.bf16.msra.mxu0 0
    %647 = vmatprep.subr.bf16.mxu0 0
    %648 = vmatpush2.bf16.msra.mxu0 0
    %649 = vmatprep.subr.bf16.mxu0 0
    %650 = vmatpush2.bf16.msra.mxu0 0
    %651 = vmatprep.subr.bf16.mxu0 0
    %652 = vmatpush2.bf16.msra.mxu0 0
    %653 = vmatprep.subr.bf16.mxu0 0
    %654 = vmatpush2.bf16.msra.mxu0 0
    %655 = vmatprep.subr.bf16.mxu0 0
    %656 = vmatpush2.bf16.msra.mxu0 0
    %657 = vmatprep.subr.bf16.mxu0 0
    %658 = vmatpush2.bf16.msra.mxu0 0
    %659 = vmatprep.subr.bf16.mxu0 0
    %660 = vmatpush2.bf16.msra.mxu0 0
    %661 = vmatprep.mubr.bf16.mxu0 0
    %662 = vmatmul.mubr.bf16.gmra.mxu0 %v627
    %v663 = vpop.f32.mrf.mxu0
    %v664 = vadd.f32 0.0, %v663
    %v665 = vpop.f32.mrf.mxu0
    %v666 = vpop.f32.mrf.mxu0
    %v667 = vadd.f32 0.0, %v666
    %v668 = vpop.f32.mrf.mxu0
    %669 = vdwg.mxu0
    %v670 = vld [vmem:[#allocation2 + $0x1c] sm:$0xf]
    %v671 = vld [vmem:[#allocation2 + $0x58] sm:$0xf]
    %v672 = vld [vmem:[#allocation2 + $0x94] sm:$0xf]
    %v673 = vld [vmem:[#allocation2 + $0xd0] sm:$0xf]
    %v674 = vld [vmem:[#allocation2 + $0x20] sm:$0xf]
    %v675 = vld [vmem:[#allocation2 + $0x5c] sm:$0xf]
    %v676 = vld [vmem:[#allocation2 + $0x98] sm:$0xf]
    %v677 = vld [vmem:[#allocation2 + $0xd4] sm:$0xf]
    %v678 = vpack.c.bf16 %v667, %v664
    %v683 = vunpack.c.l.b16 %v674
    %v684 = vunpack.c.l.b16 %v675
    %v685 = vunpack.c.l.b16 %v676
    %v686 = vunpack.c.l.b16 %v677
    %v687 = vpack.c.b16 %v684, %v683
    %v688 = vpack.c.b16 %v686, %v685
    %v692 = vsel %vm273, %v678, 0
    %694 = vmatprep.subr.bf16.mxu0 0
    %695 = vmatpush1.bf16.msra.mxu0 0
    %696 = vmatprep.subr.bf16.mxu0 0
    %697 = vmatpush1.bf16.msra.mxu0 0
    %698 = vmatprep.subr.bf16.mxu0 0
    %699 = vmatpush1.bf16.msra.mxu0 0
    %700 = vmatprep.subr.bf16.mxu0 0
    %701 = vmatpush1.bf16.msra.mxu0 0
    %702 = vmatprep.subr.bf16.mxu0 0
    %703 = vmatpush1.bf16.msra.mxu0 0
    %704 = vmatprep.subr.bf16.mxu0 0
    %705 = vmatpush1.bf16.msra.mxu0 0
    %706 = vmatprep.subr.bf16.mxu0 0
    %707 = vmatpush1.bf16.msra.mxu0 %v688
    %708 = vmatprep.subr.bf16.mxu0 0
    %709 = vmatpush1.bf16.msra.mxu0 %v687
    %710 = vmatprep.subr.bf16.mxu0 0
    %711 = vmatpush2.bf16.msra.mxu0 0
    %712 = vmatprep.subr.bf16.mxu0 0
    %713 = vmatpush2.bf16.msra.mxu0 0
    %714 = vmatprep.subr.bf16.mxu0 0
    %715 = vmatpush2.bf16.msra.mxu0 0
    %716 = vmatprep.subr.bf16.mxu0 0
    %717 = vmatpush2.bf16.msra.mxu0 0
    %718 = vmatprep.subr.bf16.mxu0 0
    %719 = vmatpush2.bf16.msra.mxu0 0
    %720 = vmatprep.subr.bf16.mxu0 0
    %721 = vmatpush2.bf16.msra.mxu0 0
    %722 = vmatprep.subr.bf16.mxu0 0
    %723 = vmatpush2.bf16.msra.mxu0 0
    %724 = vmatprep.subr.bf16.mxu0 0
    %725 = vmatpush2.bf16.msra.mxu0 0
    %726 = vmatprep.mubr.bf16.mxu0 0
    %727 = vmatmul.mubr.bf16.gmra.mxu0 %v692
    %v728 = vpop.f32.mrf.mxu0
    %v729 = vadd.f32 0.0, %v728
    %v730 = vpop.f32.mrf.mxu0
    %v731 = vpop.f32.mrf.mxu0
    %v732 = vadd.f32 0.0, %v731
    %v733 = vpop.f32.mrf.mxu0
    %734 = vdwg.mxu0
    %v739 = vunpack.c.l.b16 %v670
    %v740 = vunpack.c.l.b16 %v671
    %v741 = vunpack.c.l.b16 %v672
    %v742 = vunpack.c.l.b16 %v673
    %v743 = vpack.c.b16 %v740, %v739
    %v744 = vpack.c.b16 %v742, %v741
    %747 = vmatprep.subr.bf16.mxu0 0
    %748 = vmatpush1.bf16.msra.mxu0 0
    %749 = vmatprep.subr.bf16.mxu0 0
    %750 = vmatpush1.bf16.msra.mxu0 0
    %751 = vmatprep.subr.bf16.mxu0 0
    %752 = vmatpush1.bf16.msra.mxu0 0
    %753 = vmatprep.subr.bf16.mxu0 0
    %754 = vmatpush1.bf16.msra.mxu0 0
    %755 = vmatprep.subr.bf16.mxu0 0
    %756 = vmatpush1.bf16.msra.mxu0 0
    %757 = vmatprep.subr.bf16.mxu0 0
    %758 = vmatpush1.bf16.msra.mxu0 0
    %759 = vmatprep.subr.bf16.mxu0 0
    %760 = vmatpush1.bf16.msra.mxu0 %v744
    %761 = vmatprep.subr.bf16.mxu0 0
    %762 = vmatpush1.bf16.msra.mxu0 %v743
    %763 = vmatprep.subr.bf16.mxu0 0
    %764 = vmatpush2.bf16.msra.mxu0 0
    %765 = vmatprep.subr.bf16.mxu0 0
    %766 = vmatpush2.bf16.msra.mxu0 0
    %767 = vmatprep.subr.bf16.mxu0 0
    %768 = vmatpush2.bf16.msra.mxu0 0
    %769 = vmatprep.subr.bf16.mxu0 0
    %770 = vmatpush2.bf16.msra.mxu0 0
    %771 = vmatprep.subr.bf16.mxu0 0
    %772 = vmatpush2.bf16.msra.mxu0 0
    %773 = vmatprep.subr.bf16.mxu0 0
    %774 = vmatpush2.bf16.msra.mxu0 0
    %775 = vmatprep.subr.bf16.mxu0 0
    %776 = vmatpush2.bf16.msra.mxu0 0
    %777 = vmatprep.subr.bf16.mxu0 0
    %778 = vmatpush2.bf16.msra.mxu0 0
    %779 = vmatprep.mubr.bf16.mxu0 0
    %780 = vmatmul.mubr.bf16.gmra.mxu0 %v431
    %v781 = vpop.f32.mrf.mxu0
    %v782 = vadd.f32 %v729, %v781
    %v783 = vpop.f32.mrf.mxu0
    %v784 = vpop.f32.mrf.mxu0
    %v785 = vadd.f32 %v732, %v784
    %v786 = vpop.f32.mrf.mxu0
    %787 = vdwg.mxu0
    %v788 = vld [vmem:[#allocation2 + $0x10c] sm:$0x1]
    %v789 = vunpack.c.l.bf16 %v788
    %v790 = vlaneseq
    %v791 = vshrl.u32 %v790, 7
    %v792 = vsub.s32 0, %v791
    %v793 = vrot.slane %v789, %v792
    %v794 = vadd.f32 %v782, %v793
    %v795 = vadd.f32 %v785, %v793
    %v796 = vxor.u32 %v794, 2147483648
    %v797 = vxor.u32 %v795, 2147483648
    %v798 = vmul.f32 %v796, 1.442695
    %v799 = vpow.pop %v798
    %v800 = vmul.f32 %v797, 1.442695
    %v801 = vpow.pop %v800
    %v802 = vadd.f32 %v799, 1.0
    %v803 = vadd.f32 %v801, 1.0
    %v804 = vrcp.pop %v802
    %v805 = vmul.f32 1.0, %v804
    %v806 = vrcp.pop %v803
    %v807 = vmul.f32 1.0, %v806
    %v808 = vmul.f32 %v805, %v664
    %v809 = vmul.f32 %v807, %v667
    %v810 = vsub.f32 1.0, %v805
    %v811 = vsub.f32 1.0, %v807
    %v812 = vmul.f32 %v810, %v370
    %v813 = vmul.f32 %v811, %v371
    %v814 = vadd.f32 %v808, %v812
    %v815 = vadd.f32 %v809, %v813
    %v816 = vld [vmem:[#allocation2 + $0x24] sm:$0xf]
    %v817 = vld [vmem:[#allocation2 + $0x60] sm:$0xf]
    %v818 = vld [vmem:[#allocation2 + $0x9c] sm:$0xf]
    %v819 = vld [vmem:[#allocation2 + $0xd8] sm:$0xf]
    %v820 = vpack.c.bf16 %v815, %v814
    %v821 = vld [vmem:[#allocation2 + $0x114] sm:$0x1]
    %v822 = vunpack.c.l.bf16 %v821
    %v823 = vlaneseq
    %v824 = vshrl.u32 %v823, 7
    %v825 = vsub.s32 0, %v824
    %v826 = vrot.slane %v822, %v825
    %v831 = vunpack.c.l.b16 %v816
    %v832 = vunpack.c.l.b16 %v817
    %v833 = vunpack.c.l.b16 %v818
    %v834 = vunpack.c.l.b16 %v819
    %v835 = vpack.c.b16 %v832, %v831
    %v836 = vpack.c.b16 %v834, %v833
    %v840 = vsel %vm273, %v820, 0
    %842 = vmatprep.subr.bf16.mxu0 0
    %843 = vmatpush1.bf16.msra.mxu0 0
    %844 = vmatprep.subr.bf16.mxu0 0
    %845 = vmatpush1.bf16.msra.mxu0 0
    %846 = vmatprep.subr.bf16.mxu0 0
    %847 = vmatpush1.bf16.msra.mxu0 0
    %848 = vmatprep.subr.bf16.mxu0 0
    %849 = vmatpush1.bf16.msra.mxu0 0
    %850 = vmatprep.subr.bf16.mxu0 0
    %851 = vmatpush1.bf16.msra.mxu0 0
    %852 = vmatprep.subr.bf16.mxu0 0
    %853 = vmatpush1.bf16.msra.mxu0 0
    %854 = vmatprep.subr.bf16.mxu0 0
    %855 = vmatpush1.bf16.msra.mxu0 %v836
    %856 = vmatprep.subr.bf16.mxu0 0
    %857 = vmatpush1.bf16.msra.mxu0 %v835
    %858 = vmatprep.subr.bf16.mxu0 0
    %859 = vmatpush2.bf16.msra.mxu0 0
    %860 = vmatprep.subr.bf16.mxu0 0
    %861 = vmatpush2.bf16.msra.mxu0 0
    %862 = vmatprep.subr.bf16.mxu0 0
    %863 = vmatpush2.bf16.msra.mxu0 0
    %864 = vmatprep.subr.bf16.mxu0 0
    %865 = vmatpush2.bf16.msra.mxu0 0
    %866 = vmatprep.subr.bf16.mxu0 0
    %867 = vmatpush2.bf16.msra.mxu0 0
    %868 = vmatprep.subr.bf16.mxu0 0
    %869 = vmatpush2.bf16.msra.mxu0 0
    %870 = vmatprep.subr.bf16.mxu0 0
    %871 = vmatpush2.bf16.msra.mxu0 0
    %872 = vmatprep.subr.bf16.mxu0 0
    %873 = vmatpush2.bf16.msra.mxu0 0
    %874 = vmatprep.mubr.bf16.mxu0 0
    %875 = vmatmul.mubr.bf16.gmra.mxu0 %v840
    %v876 = vpop.f32.mrf.mxu0
    %v877 = vadd.f32 %v826, %v876
    %v878 = vpop.f32.mrf.mxu0
    %v879 = vpop.f32.mrf.mxu0
    %v880 = vadd.f32 %v826, %v879
    %v881 = vpop.f32.mrf.mxu0
    %882 = vdwg.mxu0
    %v883 = vmax.f32 %v877, 0.0
    %v884 = vmax.f32 %v880, 0.0
    %v885 = vld [vmem:[#allocation2 + $0x28] sm:$0xff]
    %v886 = vld [vmem:[#allocation2 + $0x64] sm:$0xff]
    %v887 = vld [vmem:[#allocation2 + $0xa0] sm:$0xff]
    %v888 = vld [vmem:[#allocation2 + $0xdc] sm:$0xff]
    %v889 = vpack.c.bf16 %v884, %v883
    %v890 = vld [vmem:[#allocation2 + $0x118] sm:$0x11]
    %v891 = vunpack.c.l.bf16 %v890
    %v892 = vunpack.c.h.bf16 %v890
    %v893 = vlaneseq
    %v894 = vshrl.u32 %v893, 7
    %v895 = vsub.s32 0, %v894
    %v896 = vrot.slane %v891, %v895
    %v897 = vlaneseq
    %v898 = vshrl.u32 %v897, 7
    %v899 = vsub.s32 0, %v898
    %v900 = vrot.slane %v892, %v899
    %v905 = vunpack.c.l.b16 %v885
    %v906 = vunpack.c.h.b16 %v885
    %v907 = vunpack.c.l.b16 %v886
    %v908 = vunpack.c.h.b16 %v886
    %v909 = vunpack.c.l.b16 %v887
    %v910 = vunpack.c.h.b16 %v887
    %v911 = vunpack.c.l.b16 %v888
    %v912 = vunpack.c.h.b16 %v888
    %v913 = vpack.c.b16 %v907, %v905
    %v914 = vpack.c.b16 %v908, %v906
    %v915 = vpack.c.b16 %v911, %v909
    %v916 = vpack.c.b16 %v912, %v910
    %v922 = vsel %vm273, %v889, 0
    %924 = vmatprep.subr.bf16.mxu0 0
    %925 = vmatpush1.bf16.msra.mxu0 0
    %926 = vmatprep.subr.bf16.mxu0 0
    %927 = vmatpush1.bf16.msra.mxu0 0
    %928 = vmatprep.subr.bf16.mxu0 0
    %929 = vmatpush1.bf16.msra.mxu0 0
    %930 = vmatprep.subr.bf16.mxu0 0
    %931 = vmatpush1.bf16.msra.mxu0 0
    %932 = vmatprep.subr.bf16.mxu0 0
    %933 = vmatpush1.bf16.msra.mxu0 0
    %934 = vmatprep.subr.bf16.mxu0 0
    %935 = vmatpush1.bf16.msra.mxu0 0
    %936 = vmatprep.subr.bf16.mxu0 %v916
    %937 = vmatpush1.bf16.msra.mxu0 %v915
    %938 = vmatprep.subr.bf16.mxu0 %v914
    %939 = vmatpush1.bf16.msra.mxu0 %v913
    %940 = vmatprep.subr.bf16.mxu0 0
    %941 = vmatpush2.bf16.msra.mxu0 0
    %942 = vmatprep.subr.bf16.mxu0 0
    %943 = vmatpush2.bf16.msra.mxu0 0
    %944 = vmatprep.subr.bf16.mxu0 0
    %945 = vmatpush2.bf16.msra.mxu0 0
    %946 = vmatprep.subr.bf16.mxu0 0
    %947 = vmatpush2.bf16.msra.mxu0 0
    %948 = vmatprep.subr.bf16.mxu0 0
    %949 = vmatpush2.bf16.msra.mxu0 0
    %950 = vmatprep.subr.bf16.mxu0 0
    %951 = vmatpush2.bf16.msra.mxu0 0
    %952 = vmatprep.subr.bf16.mxu0 0
    %953 = vmatpush2.bf16.msra.mxu0 0
    %954 = vmatprep.subr.bf16.mxu0 0
    %955 = vmatpush2.bf16.msra.mxu0 0
    %956 = vmatprep.mubr.bf16.mxu0 0
    %957 = vmatmul.mubr.bf16.gmra.mxu0 %v922
    %v958 = vpop.f32.mrf.mxu0
    %v959 = vadd.f32 %v896, %v958
    %v960 = vpop.f32.mrf.mxu0
    %v961 = vadd.f32 %v900, %v960
    %v962 = vpop.f32.mrf.mxu0
    %v963 = vadd.f32 %v896, %v962
    %v964 = vpop.f32.mrf.mxu0
    %v965 = vadd.f32 %v900, %v964
    %966 = vdwg.mxu0
    %967 = vst [vmem:[%s5] sm:$0xff] %v959
    %968 = vst [vmem:[%s5 + $0x8] sm:$0xff] %v961
    %969 = vst [vmem:[%s5 + $0x10] sm:$0xff] %v963
    %970 = vst [vmem:[%s5 + $0x18] sm:$0xff] %v965
    %v971 = vld [vmem:[%s2] sm:$0xff]
    %v972 = vlaneseq
    %v973 = vand.u32 %v972, 127
    %974 = vset.pattern.permute.xlu0 0
    %975 = vperm.xlu0 %974, %v971
    %v976 = vpop.permute.xlu0 %975
    %vm977 = vcmp.eq.s32.totalorder %v973, %v976
    %v978 = vsel %vm977, 1, 0
    %v979 = vcvt.s32.f32 %v978
    %980 = vset.pattern.permute.xlu0 1
    %981 = vperm.xlu0 %980, %v971
    %v982 = vpop.permute.xlu0 %981
    %vm983 = vcmp.eq.s32.totalorder %v973, %v982
    %v984 = vsel %vm983, 1, 0
    %v985 = vcvt.s32.f32 %v984
    %v987 = vsel %vm116, %v979, 0
    %v990 = vsel %vm116, %v985, 0
    %992 = vmatprep.subr.mxu0 0.0
    %993 = vmatpush1.msra.mxu0 0.0
    %994 = vmatprep.subr.mxu0 0.0
    %995 = vmatpush1.msra.mxu0 0.0
    %996 = vmatprep.subr.mxu0 0.0
    %997 = vmatpush1.msra.mxu0 0.0
    %998 = vmatprep.subr.mxu0 0.0
    %999 = vmatpush1.msra.mxu0 0.0
    %1000 = vmatprep.subr.mxu0 0.0
    %1001 = vmatpush1.msra.mxu0 0.0
    %1002 = vmatprep.subr.mxu0 0.0
    %1003 = vmatpush1.msra.mxu0 0.0
    %1004 = vmatprep.subr.mxu0 0.0
    %1005 = vmatpush1.msra.mxu0 0.0
    %1006 = vmatprep.subr.mxu0 0.0
    %1007 = vmatpush1.msra.mxu0 0.0
    %1008 = vmatprep.subr.mxu0 0.0
    %1009 = vmatpush1.msra.mxu0 0.0
    %1010 = vmatprep.subr.mxu0 0.0
    %1011 = vmatpush1.msra.mxu0 0.0
    %1012 = vmatprep.subr.mxu0 0.0
    %1013 = vmatpush1.msra.mxu0 0.0
    %1014 = vmatprep.subr.mxu0 0.0
    %1015 = vmatpush1.msra.mxu0 0.0
    %1016 = vmatprep.subr.mxu0 0.0
    %1017 = vmatpush1.msra.mxu0 0.0
    %1018 = vmatprep.subr.mxu0 0.0
    %1019 = vmatpush1.msra.mxu0 0.0
    %1020 = vmatprep.subr.mxu0 0.0
    %1021 = vmatpush1.msra.mxu0 %v963
    %1022 = vmatprep.subr.mxu0 0.0
    %1023 = vmatpush1.msra.mxu0 %v959
    %1024 = vmatprep.subr.mxu0 0.0
    %1025 = vmatpush2.msra.mxu0 0.0
    %1026 = vmatprep.subr.mxu0 0.0
    %1027 = vmatpush2.msra.mxu0 0.0
    %1028 = vmatprep.subr.mxu0 0.0
    %1029 = vmatpush2.msra.mxu0 0.0
    %1030 = vmatprep.subr.mxu0 0.0
    %1031 = vmatpush2.msra.mxu0 0.0
    %1032 = vmatprep.subr.mxu0 0.0
    %1033 = vmatpush2.msra.mxu0 0.0
    %1034 = vmatprep.subr.mxu0 0.0
    %1035 = vmatpush2.msra.mxu0 0.0
    %1036 = vmatprep.subr.mxu0 0.0
    %1037 = vmatpush2.msra.mxu0 0.0
    %1038 = vmatprep.subr.mxu0 0.0
    %1039 = vmatpush2.msra.mxu0 0.0
    %1040 = vmatprep.subr.mxu0 0.0
    %1041 = vmatpush2.msra.mxu0 0.0
    %1042 = vmatprep.subr.mxu0 0.0
    %1043 = vmatpush2.msra.mxu0 0.0
    %1044 = vmatprep.subr.mxu0 0.0
    %1045 = vmatpush2.msra.mxu0 0.0
    %1046 = vmatprep.subr.mxu0 0.0
    %1047 = vmatpush2.msra.mxu0 0.0
    %1048 = vmatprep.subr.mxu0 0.0
    %1049 = vmatpush2.msra.mxu0 0.0
    %1050 = vmatprep.subr.mxu0 0.0
    %1051 = vmatpush2.msra.mxu0 0.0
    %1052 = vmatprep.subr.mxu0 0.0
    %1053 = vmatpush2.msra.mxu0 0.0
    %1054 = vmatprep.subr.mxu0 0.0
    %1055 = vmatpush2.msra.mxu0 0.0
    %1056 = vmatprep.mubr.f32.mxu0 0.0
    %1057 = vmatmul.mubr.f32.gmra.mxu0 %v987
    %v1058 = vpop.f32.mrf.mxu0
    %v1059 = vadd.f32 0.0, %v1058
    %v1060 = vpop.f32.mrf.mxu0
    %1061 = vmatprep.mubr.f32.mxu0 0.0
    %1062 = vmatmul.mubr.f32.gmra.mxu0 %v990
    %v1063 = vpop.f32.mrf.mxu0
    %v1064 = vadd.f32 0.0, %v1063
    %v1065 = vpop.f32.mrf.mxu0
    %1066 = vdwg.mxu0
    %v1067 = vld [vmem:[#allocation2 + $0x30] sm:$0xf]
    %v1068 = vld [vmem:[#allocation2 + $0x6c] sm:$0xf]
    %v1069 = vpack.c.bf16 %v1059, %v1059
    %v1070 = vld [vmem:[#allocation2 + $0x34] sm:$0xf]
    %v1071 = vld [vmem:[#allocation2 + $0x70] sm:$0xf]
    %v1072 = vpack.c.bf16 %v1064, %v1064
    %v1075 = vunpack.c.l.b16 %v1070
    %v1076 = vunpack.c.l.b16 %v1071
    %v1077 = vpack.c.b16 %v1076, %v1075
    %v1080 = vsel %vm116, %v1072, 0
    %1082 = vmatprep.subr.bf16.mxu0 0
    %1083 = vmatpush1.bf16.msra.mxu0 0
    %1084 = vmatprep.subr.bf16.mxu0 0
    %1085 = vmatpush1.bf16.msra.mxu0 0
    %1086 = vmatprep.subr.bf16.mxu0 0
    %1087 = vmatpush1.bf16.msra.mxu0 0
    %1088 = vmatprep.subr.bf16.mxu0 0
    %1089 = vmatpush1.bf16.msra.mxu0 0
    %1090 = vmatprep.subr.bf16.mxu0 0
    %1091 = vmatpush1.bf16.msra.mxu0 0
    %1092 = vmatprep.subr.bf16.mxu0 0
    %1093 = vmatpush1.bf16.msra.mxu0 0
    %1094 = vmatprep.subr.bf16.mxu0 0
    %1095 = vmatpush1.bf16.msra.mxu0 0
    %1096 = vmatprep.subr.bf16.mxu0 0
    %1097 = vmatpush1.bf16.msra.mxu0 %v1077
    %1098 = vmatprep.subr.bf16.mxu0 0
    %1099 = vmatpush2.bf16.msra.mxu0 0
    %1100 = vmatprep.subr.bf16.mxu0 0
    %1101 = vmatpush2.bf16.msra.mxu0 0
    %1102 = vmatprep.subr.bf16.mxu0 0
    %1103 = vmatpush2.bf16.msra.mxu0 0
    %1104 = vmatprep.subr.bf16.mxu0 0
    %1105 = vmatpush2.bf16.msra.mxu0 0
    %1106 = vmatprep.subr.bf16.mxu0 0
    %1107 = vmatpush2.bf16.msra.mxu0 0
    %1108 = vmatprep.subr.bf16.mxu0 0
    %1109 = vmatpush2.bf16.msra.mxu0 0
    %1110 = vmatprep.subr.bf16.mxu0 0
    %1111 = vmatpush2.bf16.msra.mxu0 0
    %1112 = vmatprep.subr.bf16.mxu0 0
    %1113 = vmatpush2.bf16.msra.mxu0 0
    %1114 = vmatprep.mubr.bf16.mxu0 0
    %1115 = vmatmul.mubr.bf16.gmra.mxu0 %v1080
    %v1116 = vpop.f32.mrf.mxu0
    %v1117 = vadd.f32 0.0, %v1116
    %v1118 = vpop.f32.mrf.mxu0
    %v1119 = vpop.f32.mrf.mxu0
    %v1120 = vpop.f32.mrf.mxu0
    %1121 = vdwg.mxu0
    %v1124 = vunpack.c.l.b16 %v1067
    %v1125 = vunpack.c.l.b16 %v1068
    %v1126 = vpack.c.b16 %v1125, %v1124
    %v1129 = vsel %vm116, %v1069, 0
    %1131 = vmatprep.subr.bf16.mxu0 0
    %1132 = vmatpush1.bf16.msra.mxu0 0
    %1133 = vmatprep.subr.bf16.mxu0 0
    %1134 = vmatpush1.bf16.msra.mxu0 0
    %1135 = vmatprep.subr.bf16.mxu0 0
    %1136 = vmatpush1.bf16.msra.mxu0 0
    %1137 = vmatprep.subr.bf16.mxu0 0
    %1138 = vmatpush1.bf16.msra.mxu0 0
    %1139 = vmatprep.subr.bf16.mxu0 0
    %1140 = vmatpush1.bf16.msra.mxu0 0
    %1141 = vmatprep.subr.bf16.mxu0 0
    %1142 = vmatpush1.bf16.msra.mxu0 0
    %1143 = vmatprep.subr.bf16.mxu0 0
    %1144 = vmatpush1.bf16.msra.mxu0 0
    %1145 = vmatprep.subr.bf16.mxu0 0
    %1146 = vmatpush1.bf16.msra.mxu0 %v1126
    %1147 = vmatprep.subr.bf16.mxu0 0
    %1148 = vmatpush2.bf16.msra.mxu0 0
    %1149 = vmatprep.subr.bf16.mxu0 0
    %1150 = vmatpush2.bf16.msra.mxu0 0
    %1151 = vmatprep.subr.bf16.mxu0 0
    %1152 = vmatpush2.bf16.msra.mxu0 0
    %1153 = vmatprep.subr.bf16.mxu0 0
    %1154 = vmatpush2.bf16.msra.mxu0 0
    %1155 = vmatprep.subr.bf16.mxu0 0
    %1156 = vmatpush2.bf16.msra.mxu0 0
    %1157 = vmatprep.subr.bf16.mxu0 0
    %1158 = vmatpush2.bf16.msra.mxu0 0
    %1159 = vmatprep.subr.bf16.mxu0 0
    %1160 = vmatpush2.bf16.msra.mxu0 0
    %1161 = vmatprep.subr.bf16.mxu0 0
    %1162 = vmatpush2.bf16.msra.mxu0 0
    %1163 = vmatprep.mubr.bf16.mxu0 0
    %1164 = vmatmul.mubr.bf16.gmra.mxu0 %v1129
    %v1165 = vpop.f32.mrf.mxu0
    %v1166 = vadd.f32 %v1117, %v1165
    %v1167 = vpop.f32.mrf.mxu0
    %v1168 = vpop.f32.mrf.mxu0
    %v1169 = vpop.f32.mrf.mxu0
    %1170 = vdwg.mxu0
    %v1171 = vld [vmem:[#allocation2 + $0x120] sm:$0x1]
    %v1172 = vunpack.c.l.bf16 %v1171
    %v1173 = vlaneseq
    %v1174 = vshrl.u32 %v1173, 7
    %v1175 = vsub.s32 0, %v1174
    %v1176 = vrot.slane %v1172, %v1175
    %v1177 = vadd.f32 %v1166, %v1176
    %v1178 = vmax.f32 %v1177, 0.0
    %v1179 = vld [vmem:[#allocation2 + $0x38] sm:$0xf]
    %v1180 = vld [vmem:[#allocation2 + $0x74] sm:$0xf]
    %v1181 = vld [vmem:[#allocation2 + $0xb0] sm:$0xf]
    %v1182 = vld [vmem:[#allocation2 + $0xec] sm:$0xf]
    %v1183 = vpack.c.bf16 %v1178, %v1178
    %v1184 = vld [vmem:[#allocation2 + $0x128] sm:$0x1]
    %v1185 = vunpack.c.l.bf16 %v1184
    %1187 = vset.pattern.permute.xlu0 0
    %1188 = vperm.xlu0 %1187, %v1185
    %v1189 = vpop.permute.xlu0 %1188
    %v1195 = vunpack.c.l.b16 %v1179
    %v1196 = vunpack.c.l.b16 %v1180
    %v1197 = vunpack.c.l.b16 %v1181
    %v1198 = vunpack.c.l.b16 %v1182
    %v1199 = vpack.c.b16 %v1196, %v1195
    %v1200 = vpack.c.b16 %v1198, %v1197
    %1203 = vxpose.xlu0.c.b16.start [1/8] %v1199, 128
    %1204 = vxpose.xlu0.c.b16.cont [2/8] %v1200, 128
    %1205 = vxpose.xlu0.c.b16.cont [3/8] 0, 128
    %1206 = vxpose.xlu0.c.b16.cont [4/8] 0, 128
    %1207 = vxpose.xlu0.c.b16.cont [5/8] 0, 128
    %1208 = vxpose.xlu0.c.b16.cont [6/8] 0, 128
    %1209 = vxpose.xlu0.c.b16.cont [7/8] 0, 128
    %1210 = vxpose.xlu0.c.b16.end [8/8] 0, 128
    %v1211 = vpop.trf.xlu0
    %v1212 = vpop.trf.xlu0
    %v1213 = vpop.trf.xlu0
    %v1214 = vpop.trf.xlu0
    %v1215 = vpop.trf.xlu0
    %v1216 = vpop.trf.xlu0
    %v1217 = vpop.trf.xlu0
    %v1218 = vpop.trf.xlu0
    %v1220 = vsel %vm273, %v1211, 0
    %v1223 = vsel %vm273, %v1183, 0
    %1225 = vmatprep.subr.bf16.mxu0 0
    %1226 = vmatpush1.bf16.xpose.msra.mxu0 0
    %1227 = vmatprep.subr.bf16.mxu0 0
    %1228 = vmatpush1.bf16.xpose.msra.mxu0 0
    %1229 = vmatprep.subr.bf16.mxu0 0
    %1230 = vmatpush1.bf16.xpose.msra.mxu0 0
    %1231 = vmatprep.subr.bf16.mxu0 0
    %1232 = vmatpush1.bf16.xpose.msra.mxu0 0
    %1233 = vmatprep.subr.bf16.mxu0 0
    %1234 = vmatpush1.bf16.xpose.msra.mxu0 0
    %1235 = vmatprep.subr.bf16.mxu0 0
    %1236 = vmatpush1.bf16.xpose.msra.mxu0 0
    %1237 = vmatprep.subr.bf16.mxu0 0
    %1238 = vmatpush1.bf16.xpose.msra.mxu0 0
    %1239 = vmatprep.subr.bf16.mxu0 0
    %1240 = vmatpush1.bf16.xpose.msra.mxu0 %v1223
    %1241 = vmatprep.subr.bf16.mxu0 0
    %1242 = vmatpush2.bf16.xpose.msra.mxu0 0
    %1243 = vmatprep.subr.bf16.mxu0 0
    %1244 = vmatpush2.bf16.xpose.msra.mxu0 0
    %1245 = vmatprep.subr.bf16.mxu0 0
    %1246 = vmatpush2.bf16.xpose.msra.mxu0 0
    %1247 = vmatprep.subr.bf16.mxu0 0
    %1248 = vmatpush2.bf16.xpose.msra.mxu0 0
    %1249 = vmatprep.subr.bf16.mxu0 0
    %1250 = vmatpush2.bf16.xpose.msra.mxu0 0
    %1251 = vmatprep.subr.bf16.mxu0 0
    %1252 = vmatpush2.bf16.xpose.msra.mxu0 0
    %1253 = vmatprep.subr.bf16.mxu0 0
    %1254 = vmatpush2.bf16.xpose.msra.mxu0 0
    %1255 = vmatprep.subr.bf16.mxu0 0
    %1256 = vmatpush2.bf16.xpose.msra.mxu0 0
    %1257 = vmatprep.mubr.bf16.mxu0 0
    %1258 = vmatmul.mubr.bf16.gmra.mxu0 %v1220
    %v1259 = vpop.f32.mrf.mxu0
    %v1260 = vadd.f32 %v1189, %v1259
    %v1261 = vpop.f32.mrf.mxu0
    %v1262 = vpop.f32.mrf.mxu0
    %v1263 = vpop.f32.mrf.mxu0
    %1264 = vdwg.mxu0
    %v1265 = vsel %vm137, %v1260, 0.0
    %1266 = vst [vmem:[%s6] sm:$0x1] %v1265
    // Predicated region
    $region22: #{regnet_forward.1} parent=1 // pred_check
      _
    $region23: #{regnet_forward.1} parent=1 // pred_check_branch
      %1268 = sbr.rel (0) target = $region25
    $region24: #{regnet_forward.1} parent=1 // pred_region
      %s1270 = ssub.s32 256, 256
      %1271 = vsyncadd [#allocation4], %s1270
      %s1272 = sshll.u32 [#allocation6], 4
      %s1273 = int_to_ptr.vmem [resolvable:$true] %s1272
      %1278 = dma.vmem_to_hbm [thread:$0]  %s1273, 256, %s4, [#allocation4], 128, 128, 8
    $region25: #{regnet_forward.1} parent=1 // pred_fallthru
      _
    // Predicated region
    $region26: #{regnet_forward.1} parent=1 // pred_check
      _
    $region27: #{regnet_forward.1} parent=1 // pred_check_branch
      %1280 = sbr.rel (0) target = $region29
    $region28: #{regnet_forward.1} parent=1 // pred_region
      _
    $region29: #{regnet_forward.1} parent=1 // pred_fallthru
      _
    // Predicated region
    $region30: #{regnet_forward.1} parent=1 // pred_check
      _
    $region31: #{regnet_forward.1} parent=1 // pred_check_branch
      %1282 = sbr.rel (0) target = $region33
    $region32: #{regnet_forward.1} parent=1 // pred_region
      _
    $region33: #{regnet_forward.1} parent=1 // pred_fallthru
      _
    // Predicated region
    $region34: #{regnet_forward.1} parent=1 // pred_check
      _
    $region35: #{regnet_forward.1} parent=1 // pred_check_branch
      %1284 = sbr.rel (0) target = $region37
    $region36: #{regnet_forward.1} parent=1 // pred_region
      %s1286 = ssub.s32 16, 16
      %1287 = vsyncadd [#allocation5], %s1286
      %1290 = dma.smem_to_hbm [#allocation7], 16, %s7, [#allocation5]
    $region37: #{regnet_forward.1} parent=1 // pred_fallthru
      _
    // Predicated region
    $region38: #{regnet_forward.1} parent=1 // pred_check
      _
    $region39: #{regnet_forward.1} parent=1 // pred_check_branch
      %1292 = sbr.rel (0) target = $region41
    $region40: #{regnet_forward.1} parent=1 // pred_region
      %1293 = dma.done [#allocation4], 256
    $region41: #{regnet_forward.1} parent=1 // pred_fallthru
      _
    // Predicated region
    $region42: #{regnet_forward.1} parent=1 // pred_check
      _
    $region43: #{regnet_forward.1} parent=1 // pred_check_branch
      %1295 = sbr.rel (0) target = $region45
    $region44: #{regnet_forward.1} parent=1 // pred_region
      _
    $region45: #{regnet_forward.1} parent=1 // pred_fallthru
      _
    // Predicated region
    $region46: #{regnet_forward.1} parent=1 // pred_check
      _
    $region47: #{regnet_forward.1} parent=1 // pred_check_branch
      %1297 = sbr.rel (0) target = $region49
    $region48: #{regnet_forward.1} parent=1 // pred_region
      _
    $region49: #{regnet_forward.1} parent=1 // pred_fallthru
      _
    // Predicated region
    $region50: #{regnet_forward.1} parent=1 // pred_check
      _
    $region51: #{regnet_forward.1} parent=1 // pred_check_branch
      %1299 = sbr.rel (0) target = $region53
    $region52: #{regnet_forward.1} parent=1 // pred_region
      %1300 = dma.done [#allocation5], 16
    $region53: #{regnet_forward.1} parent=1 // pred_fallthru
      _
    %1301 = sfence
    %1302 = vsyncpa [#allocation3], 1
    %1303 = vsyncpa [#allocation4], 1
    %1304 = vsyncpa [#allocation5], 1

</llo_original>
